<compile_context>
chip_gen: v5e
topology: v5e:2x2
jax: 0.10.0
libtpu: 0.0.40
codegen_flags: <defaults>
</compile_context>

<pallas_src>
import jax
import jax.numpy as jnp
from jax.experimental import pallas as pl
from jax.experimental.pallas import tpu as pltpu

HIDDEN = 768          # roberta hidden size (fixed by the module: Linear(768, ...))
ATT_HID = 512         # attention head hidden size
N_EXTRA = 4           # avg_sent_len, dale_words, hard_word, spacy_trial
N_HEADS = 12
N_LAYERS = 2          # reduced depth stand-in (see TODO above)
FFN = 3072
LN_EPS = 1e-7


# ----------------------------------------------------------------------------
# Pallas kernel: fused attention-pooling head -> per-example context vectors
# ----------------------------------------------------------------------------
def _attn_pool_kernel(h_ref, w1_ref, b1w2_ref, ctx_ref):
    # h_ref    : (TB, S, 768) bf16   TB examples of last-layer hidden states
    # w1_ref   : (768, 512)   bf16   attention Linear(768,512) weight
    # b1w2_ref : (2, 512)     f32    row 0 = b1, row 1 = w2 (Linear(512,1) weight)
    # ctx_ref  : (1, TB, 768) f32    attention-pooled context vectors (lane-dense)
    tb, s_len, hid = h_ref.shape

    h = h_ref[...]                                     # (TB, S, 768) bf16
    h2 = h.reshape(tb * s_len, hid)                    # one big MXU matmul, M = TB*S
    z = jnp.tanh(
        jnp.dot(h2, w1_ref[...], preferred_element_type=jnp.float32)
        + b1w2_ref[0:1, :])                            # (TB*S, 512) f32

    # scores = z @ w2  (Linear(512, 1)).  Its bias b2 is omitted on purpose:
    # the softmax below is shift-invariant, so a per-example constant is a
    # mathematical no-op.
    scores = jnp.sum(z.reshape(tb, s_len, ATT_HID) * b1w2_ref[1:2, :],
                     axis=-1, keepdims=True)           # (TB, S, 1)

    # per-example softmax over the sequence axis
    m = jnp.max(scores, axis=1, keepdims=True)         # (TB, 1, 1)
    p = jnp.exp(scores - m)
    denom = jnp.sum(p, axis=1, keepdims=True)
    w = p * pl.reciprocal(denom, approx=True)          # (TB, S, 1), EUP reciprocal

    # context_vector = sum_over_seq(weights * hidden)
    ctx_ref[0] = jnp.sum(w * h.astype(jnp.float32), axis=1)   # (TB, 768)


def _choose_tb(batch, seq, hid, itemsize=2, vmem_budget=4 * 1024 * 1024):
    """Examples per grid step, sized against the double-buffered bf16 h tile.

    Budget is conservative (4 MiB for the h double-buffer) so the kernel stays
    comfortably inside v5e's 16 MiB scoped default and v7x's 64 MiB physical
    VMEM; raise vmem_limit_bytes + budget together for bigger tiles.
    """
    per_example = 2 * seq * hid * itemsize            # double-buffered bf16 tile bytes
    tb = int(max(1, min(batch, vmem_budget // per_example)))
    # keep >= 2 grid steps when possible so the v7x megacore can shard the
    # "parallel" batch axis across both TensorCores
    while tb > 1 and pl.cdiv(batch, tb) < 2:
        tb = (tb + 1) // 2
    return tb


def attention_pool_pallas(hidden_states, p, *, tb=None):
    """hidden_states: (B, S, 768) f32 -> attention-pooled context (B, 768) f32."""
    B, S, H = hidden_states.shape
    if tb is None:
        tb = _choose_tb(B, S, H)
    n_tiles = pl.cdiv(B, tb)
    b_pad = n_tiles * tb

    # bf16 at the HBM->VMEM boundary: halves the dominant DMA and uses the
    # bf16-native MXU; accumulation / softmax / pooling stay f32 in-kernel.
    hs = hidden_states.astype(jnp.bfloat16)
    if b_pad != B:
        hs = jnp.pad(hs, ((0, b_pad - B), (0, 0), (0, 0)))
    w1 = p["w1"].astype(jnp.bfloat16)
    b1w2 = jnp.concatenate([p["b1"], p["w2"]], axis=0).astype(jnp.float32)  # (2, 512)

    ctx = pl.pallas_call(
        _attn_pool_kernel,
        out_shape=jax.ShapeDtypeStruct((n_tiles, tb, H), jnp.float32),
        grid_spec=pltpu.PrefetchScalarGridSpec(
            num_scalar_prefetch=0,
            grid=(n_tiles,),
            in_specs=[
                pl.BlockSpec((tb, S, H), lambda t: (t, 0, 0)),   # hidden states
                # grid-invariant weights: constant index_map => fetched once
                pl.BlockSpec((H, ATT_HID), lambda t: (0, 0)),    # w1 (768,512)
                pl.BlockSpec((2, ATT_HID), lambda t: (0, 0)),    # packed [b1; w2]
            ],
            # lane-dense output: 768 lanes per store (no masked vst.msk)
            out_specs=pl.BlockSpec((1, tb, H), lambda t: (t, 0, 0)),
        ),
        compiler_params=pltpu.CompilerParams(
            dimension_semantics=("parallel",),
            vmem_limit_bytes=32 * 1024 * 1024,
        ),
    )(hs, w1, b1w2)
    return ctx.reshape(b_pad, H)[:B]                              # (B, 768)


# ----------------------------------------------------------------------------
# Plain-JAX glue: RoBERTa-style encoder stand-in (deterministic synthetic wts)
# ----------------------------------------------------------------------------
def _layer_norm(x, g, b, eps=LN_EPS):
    mu = jnp.mean(x, axis=-1, keepdims=True)
    var = jnp.mean((x - mu) ** 2, axis=-1, keepdims=True)
    return (x - mu) / jnp.sqrt(var + eps) * g + b


def roberta_like_encoder(p, input_ids, attention_mask):
    tok = p["tok_emb"][input_ids]                                    # (B, S, H)
    pos = p["pos_emb"][jnp.arange(input_ids.shape[1])][None]
    x = _layer_norm(tok + pos, p["emb_ln_g"], p["emb_ln_b"])
    add_mask = (1.0 - attention_mask.astype(jnp.float32))[:, None, None, :] * -1e9
    B, S, H = x.shape
    dh = H // N_HEADS
    for lyr in p["layers"]:
        def heads(w, b):
            return (x @ w + b).reshape(B, S, N_HEADS, dh).transpose(0, 2, 1, 3)
        q, k, v = heads(lyr["wq"], lyr["bq"]), heads(lyr["wk"], lyr["bk"]), heads(lyr["wv"], lyr["bv"])
        att = jax.nn.softmax(q @ k.transpose(0, 1, 3, 2) / jnp.sqrt(float(dh)) + add_mask, axis=-1)
        ctx = (att @ v).transpose(0, 2, 1, 3).reshape(B, S, H)
        x = _layer_norm(x + ctx @ lyr["wo"] + lyr["bo"], lyr["ln1_g"], lyr["ln1_b"])
        hh = jax.nn.gelu(x @ lyr["w_ff1"] + lyr["b_ff1"])
        x = _layer_norm(x + hh @ lyr["w_ff2"] + lyr["b_ff2"], lyr["ln2_g"], lyr["ln2_b"])
    return x                                                         # last hidden states


def init_params(key, vocab, max_seq):
    ks = jax.random.split(key, 8 + 10 * N_LAYERS)
    n = lambda i, shape, s=0.02: (jax.random.normal(ks[i], shape, jnp.float32) * s)
    rob = {
        "tok_emb": n(0, (vocab, HIDDEN)),
        "pos_emb": n(1, (max_seq, HIDDEN)),
        "emb_ln_g": jnp.ones((HIDDEN,), jnp.float32),
        "emb_ln_b": jnp.zeros((HIDDEN,), jnp.float32),
        "layers": [],
    }
    idx = 2
    for _ in range(N_LAYERS):
        lyr = {
            "wq": n(idx + 0, (HIDDEN, HIDDEN)), "bq": jnp.zeros((HIDDEN,), jnp.float32),
            "wk": n(idx + 1, (HIDDEN, HIDDEN)), "bk": jnp.zeros((HIDDEN,), jnp.float32),
            "wv": n(idx + 2, (HIDDEN, HIDDEN)), "bv": jnp.zeros((HIDDEN,), jnp.float32),
            "wo": n(idx + 3, (HIDDEN, HIDDEN)), "bo": jnp.zeros((HIDDEN,), jnp.float32),
            "w_ff1": n(idx + 4, (HIDDEN, FFN)), "b_ff1": jnp.zeros((FFN,), jnp.float32),
            "w_ff2": n(idx + 5, (FFN, HIDDEN)), "b_ff2": jnp.zeros((HIDDEN,), jnp.float32),
            "ln1_g": jnp.ones((HIDDEN,), jnp.float32), "ln1_b": jnp.zeros((HIDDEN,), jnp.float32),
            "ln2_g": jnp.ones((HIDDEN,), jnp.float32), "ln2_b": jnp.zeros((HIDDEN,), jnp.float32),
        }
        rob["layers"].append(lyr)
        idx += 6
    kh = jax.random.split(ks[idx], 6)
    head = {
        "w1": jax.random.normal(kh[0], (HIDDEN, ATT_HID), jnp.float32) * 0.02,
        "b1": jnp.zeros((1, ATT_HID), jnp.float32),
        "w2": jax.random.normal(kh[1], (1, ATT_HID), jnp.float32) * 0.02,
        "b2": jnp.zeros((1, 1), jnp.float32),
        "wf": jax.random.normal(kh[2], (1, HIDDEN), jnp.float32) * 0.02,
        "bf": jnp.full((1, 1), 0.1, jnp.float32),
        "wr0": jax.random.normal(kh[3], (1, 1), jnp.float32) * 0.3,
        "wrf": jax.random.normal(kh[4], (1, N_EXTRA), jnp.float32) * 0.3,
        "br": jnp.full((1, 1), 0.05, jnp.float32),
    }
    return {"roberta": rob, "head": head}


def model_rob_forward(params, input_ids, attention_mask,
                      avg_sent_len, dale_words, hard_word_f, spacy_trial_f):
    hs = roberta_like_encoder(params["roberta"], input_ids, attention_mask)   # (B,S,768)
    ctx = attention_pool_pallas(hs, params["head"])                           # (B,768)

    # fc1 + concat of the 4 scalar features + relu + regressor(5->1):
    # O(B) scalar FLOPs, fused for free by XLA — intentionally kept out of the
    # kernel to avoid tiny padded VMEM operands / extra DMA descriptors.
    hp = params["head"]
    red = ctx @ hp["wf"].T + hp["bf"]                                         # (B,1)
    feats = jnp.stack([avg_sent_len, dale_words, hard_word_f, spacy_trial_f],
                      axis=-1).astype(jnp.float32)                            # (B,4)
    x = jnp.maximum(jnp.concatenate([red, feats], axis=1), 0.0)               # (B,5)
    wr = jnp.concatenate([hp["wr0"], hp["wrf"]], axis=1)                      # (1,5)
    return x @ wr.T + hp["br"]                                                # (B,1)


# pure-JAX reference of the head (for a correctness check of the kernel)
def _head_reference(hs, feats, p):
    z = jnp.tanh(hs @ p["w1"] + p["b1"][0])
    s = jnp.einsum("bsk,k->bs", z, p["w2"][0]) + p["b2"][0, 0]
    w = jax.nn.softmax(s, axis=1)[..., None]
    ctx = jnp.sum(w * hs, axis=1)
    red = ctx @ p["wf"][0] + p["bf"][0, 0]
    x = jnp.maximum(jnp.concatenate([red[:, None], feats], axis=1), 0.0)
    wr = jnp.concatenate([p["wr0"], p["wrf"]], axis=1)[0]
    return (x @ wr)[:, None] + p["br"][0, 0]


if __name__ == "__main__":
    key = jax.random.PRNGKey(0)
    B, S, VOCAB = 2, 8, 100
    kp, kid, k1, k2, k3, k4 = jax.random.split(key, 6)

    params = init_params(kp, VOCAB, S)

    input_ids = jax.random.randint(kid, (B, S), 0, VOCAB, dtype=jnp.int32)
    attention_mask = jnp.ones((B, S), dtype=jnp.int32)
    avg_sent_len = jax.random.uniform(k1, (B,), jnp.float32, 5.0, 25.0)
    dale_words = jax.random.uniform(k2, (B,), jnp.float32, 0.0, 1.0)
    hard_word_f = jax.random.uniform(k3, (B,), jnp.float32, 0.0, 1.0)
    spacy_trial_f = jax.random.uniform(k4, (B,), jnp.float32, 0.0, 1.0)

    out = model_rob_forward(params, input_ids, attention_mask,
                            avg_sent_len, dale_words, hard_word_f, spacy_trial_f)
    out = jax.block_until_ready(out)
    assert out.shape == (B, 1)

    # verify the Pallas head against a pure-JAX reference.  The reference is
    # evaluated with the same bf16-quantized hidden states / w1 the kernel
    # sees, so only accumulation-order / approx-reciprocal noise remains.
    hs = roberta_like_encoder(params["roberta"], input_ids, attention_mask)
    feats = jnp.stack([avg_sent_len, dale_words, hard_word_f, spacy_trial_f],
                      axis=-1).astype(jnp.float32)
    head_q = dict(params["head"])
    head_q["w1"] = params["head"]["w1"].astype(jnp.bfloat16).astype(jnp.float32)
    hs_q = hs.astype(jnp.bfloat16).astype(jnp.float32)
    ref = _head_reference(hs_q, feats, head_q)
    assert jnp.allclose(out, ref, rtol=5e-3, atol=5e-3), (out, ref)

    print("KERNEL_OK")
</pallas_src>

<mosaic_0001>
module attributes {stable_mosaic.version = 11 : i64} {
  func.func @_attn_pool_kernel(%arg0: i32, %arg1: memref<1x8x768xbf16, #tpu.memory_space<vmem>>, %arg2: memref<768x512xbf16, #tpu.memory_space<vmem>>, %arg3: memref<2x512xf32, #tpu.memory_space<vmem>>, %arg4: memref<1x1x768xf32, #tpu.memory_space<vmem>>) attributes {dimension_semantics = [#tpu.dimension_semantics<parallel>], iteration_bounds = array<i64: 2>, scalar_prefetch = 0 : i64, scratch_operands = 0 : i64, tpu.core_type = #tpu.core_type<tc>, window_params = [{transform_indices = @transform_0, window_bounds = array<i64: 1, 8, 768>}, {pipeline_mode = #tpu.pipeline_mode<synchronous>, transform_indices = @transform_1, window_bounds = array<i64: 768, 512>}, {pipeline_mode = #tpu.pipeline_mode<synchronous>, transform_indices = @transform_2, window_bounds = array<i64: 2, 512>}, {transform_indices = @transform_3, window_bounds = array<i64: 1, 1, 768>}]} {
    %c0 = arith.constant 0 : index
    %c0_0 = arith.constant 0 : index
    %c0_1 = arith.constant 0 : index
    %0 = vector.load %arg1[%c0, %c0_0, %c0_1] : memref<1x8x768xbf16, #tpu.memory_space<vmem>>, vector<1x8x768xbf16>
    %1 = vector.shape_cast %0 : vector<1x8x768xbf16> to vector<8x768xbf16>
    %c0_2 = arith.constant 0 : index
    %c0_3 = arith.constant 0 : index
    %2 = vector.load %arg2[%c0_2, %c0_3] : memref<768x512xbf16, #tpu.memory_space<vmem>>, vector<768x512xbf16>
    %cst = arith.constant dense<0.000000e+00> : vector<8x512xf32>
    %3 = tpu.matmul %1, %2, %cst {dimension_numbers = #tpu.dot_dimension_numbers<[1], [0], [0], [1], [0, 0, 1, 1], [], []>} : vector<8x768xbf16>, vector<768x512xbf16>, vector<8x512xf32> -> vector<8x512xf32>
    %c0_4 = arith.constant 0 : index
    %c0_5 = arith.constant 0 : index
    %4 = vector.load %arg3[%c0_4, %c0_5] : memref<2x512xf32, #tpu.memory_space<vmem>>, vector<1x512xf32>
    %5 = vector.broadcast %4 : vector<1x512xf32> to vector<8x512xf32>
    %6 = arith.addf %3, %5 : vector<8x512xf32>
    %7 = math.tanh %6 : vector<8x512xf32>
    %8 = vector.shape_cast %7 : vector<8x512xf32> to vector<1x8x512xf32>
    %c1 = arith.constant 1 : index
    %c0_6 = arith.constant 0 : index
    %9 = vector.load %arg3[%c1, %c0_6] : memref<2x512xf32, #tpu.memory_space<vmem>>, vector<1x512xf32>
    %10 = vector.shape_cast %9 : vector<1x512xf32> to vector<1x1x512xf32>
    %11 = vector.broadcast %10 : vector<1x1x512xf32> to vector<1x8x512xf32>
    %12 = arith.mulf %8, %11 : vector<1x8x512xf32>
    %cst_7 = arith.constant dense<0.000000e+00> : vector<1x8xf32>
    %13 = vector.multi_reduction <add>, %12, %cst_7 [2] : vector<1x8x512xf32> to vector<1x8xf32>
    %14 = vector.shape_cast %13 : vector<1x8xf32> to vector<1x8x1xf32>
    %cst_8 = arith.constant dense<0xFF800000> : vector<1x1xf32>
    %15 = vector.multi_reduction <maximumf>, %14, %cst_8 [1] : vector<1x8x1xf32> to vector<1x1xf32>
    %16 = vector.shape_cast %15 : vector<1x1xf32> to vector<1x1x1xf32>
    %17 = vector.broadcast %16 : vector<1x1x1xf32> to vector<1x8x1xf32>
    %18 = arith.subf %14, %17 : vector<1x8x1xf32>
    %19 = math.exp %18 : vector<1x8x1xf32>
    %cst_9 = arith.constant dense<0.000000e+00> : vector<1x1xf32>
    %20 = vector.multi_reduction <add>, %19, %cst_9 [1] : vector<1x8x1xf32> to vector<1x1xf32>
    %21 = vector.shape_cast %20 : vector<1x1xf32> to vector<1x1x1xf32>
    %22 = tpu.reciprocal %21 {approx = true} : vector<1x1x1xf32> -> vector<1x1x1xf32>
    %23 = vector.broadcast %22 : vector<1x1x1xf32> to vector<1x8x1xf32>
    %24 = arith.mulf %19, %23 : vector<1x8x1xf32>
    %25 = arith.extf %0 : vector<1x8x768xbf16> to vector<1x8x768xf32>
    %26 = vector.broadcast %24 : vector<1x8x1xf32> to vector<1x8x768xf32>
    %27 = arith.mulf %26, %25 : vector<1x8x768xf32>
    %cst_10 = arith.constant dense<0.000000e+00> : vector<1x768xf32>
    %28 = vector.multi_reduction <add>, %27, %cst_10 [1] : vector<1x8x768xf32> to vector<1x768xf32>
    %c0_11 = arith.constant 0 : index
    %c0_12 = arith.constant 0 : index
    %c0_13 = arith.constant 0 : index
    %29 = vector.load %arg4[%c0_11, %c0_12, %c0_13] : memref<1x1x768xf32, #tpu.memory_space<vmem>>, vector<1x1x768xf32>
    %30 = vector.shape_cast %29 : vector<1x1x768xf32> to vector<1x768xf32>
    %31 = vector.shape_cast %28 : vector<1x768xf32> to vector<1x1x768xf32>
    tpu.vector_store %arg4[%c0_11, %c0_12, %c0_13], %31 {strides = array<i32>} : memref<1x1x768xf32, #tpu.memory_space<vmem>>, vector<1x1x768xf32>,
    return
  }
  func.func @transform_0(%arg0: i32) -> (i32, i32, i32) {
    %c0_i32 = arith.constant 0 : i32
    %c0_i32_0 = arith.constant 0 : i32
    %c0_i32_1 = arith.constant 0 : i32
    return %arg0, %c0_i32, %c0_i32_0 : i32, i32, i32
  }
  func.func @transform_1(%arg0: i32) -> (i32, i32) {
    %c0_i32 = arith.constant 0 : i32
    %c0_i32_0 = arith.constant 0 : i32
    %c0_i32_1 = arith.constant 0 : i32
    return %c0_i32, %c0_i32_0 : i32, i32
  }
  func.func @transform_2(%arg0: i32) -> (i32, i32) {
    %c0_i32 = arith.constant 0 : i32
    %c0_i32_0 = arith.constant 0 : i32
    %c0_i32_1 = arith.constant 0 : i32
    return %c0_i32, %c0_i32_0 : i32, i32
  }
  func.func @transform_3(%arg0: i32) -> (i32, i32, i32) {
    %c0_i32 = arith.constant 0 : i32
    %c0_i32_0 = arith.constant 0 : i32
    %c0_i32_1 = arith.constant 0 : i32
    return %arg0, %c0_i32, %c0_i32_0 : i32, i32, i32
  }
}

</mosaic_0001>

<llo_original>
// kernel: tpu_custom_call.1
$region0: #{tpu_custom_call.1}
  #allocation0 [shape = 'u32[]', space=smem, size = 0x4, offset = 0x4, fixed_abs, tag = 'smem constant byte address 0x4 - core index']
  #allocation1 [shape = 'u32[72,128]{1,0:T(1,128)}', space=vmem, size = 0x9000, scoped, tag = 'internal scratch']
  %s0 = inlined_call_operand.hbm [shape: bf16[2,8,768], index: 0, kind: input, shape index: {}]
  %s1 = inlined_call_operand.hbm [shape: bf16[768,512], index: 1, kind: input, shape index: {}]
  %s2 = inlined_call_operand.hbm [shape: f32[2,512], index: 2, kind: input, shape index: {}]
  %s3 = inlined_call_operand.hbm [shape: f32[2,1,768], index: 3, kind: output, shape index: {}]
  %s4 = sld [smem:[#allocation0]]
  $region57: #{tpu_custom_call.1} parent=0
    _
  %s6 = ssub.s32 1, %s4
  %s7 = scalar_select 0, %s6, %s4
  $region1: #{tpu_custom_call.1} parent=0
    #allocation2 [shape = 'u8[24576]{0}', space=vmem, size = 0x6000, scoped, tag = 'input window, operand 0']
    #allocation3 [shape = 's32[2]{0}', space=sflag, size = 0x8, scoped, tag = 'scoped memory for tpu_custom_call.1']
    #allocation4 [shape = 's32[2]{0}', space=sflag, size = 0x8, scoped, tag = 'scoped memory for tpu_custom_call.1']
    #allocation5 [shape = 'u8[786432]{0}', space=vmem, size = 0xc0000, scoped, tag = 'input window, operand 1, single buffered']
    #allocation6 [shape = 's32[1]{0}', space=sflag, size = 0x4, scoped, tag = 'scoped memory for tpu_custom_call.1']
    #allocation7 [shape = 'u8[4096]{0}', space=vmem, size = 0x1000, scoped, tag = 'input window, operand 2, single buffered']
    #allocation8 [shape = 'u8[6144]{0}', space=vmem, size = 0x1800, scoped, tag = 'output window, operand 0']
    %8 = vsyncpa [#allocation3], 0
    %s9 = scalar_lea.sflag [#allocation3], 1
    %10 = vsyncpa %s9, 0
    %11 = vsyncpa [#allocation6], 0
    %12 = vsyncpa [#allocation4], 0
    %s13 = scalar_lea.sflag [#allocation4], 1
    %14 = vsyncpa %s13, 0
    loop: start=0, step=1, limit=4
    $region2: #{tpu_custom_call.1} parent=1 // loop_pre_header
      _
    $region3: #{tpu_custom_call.1} parent=1 // loop_header
      %s16 = sphi 0, %s20
      %p17 = scmp.ge.s32.totalorder %s16, 4
      %s26 = sphi 0, %s28
      %s29 = sphi 0, %s26
      %s30 = sphi 0, %s29
      %s46 = sphi 0, %s30
      %s50 = sphi 0, %s50
      %s52 = sphi 0, %s50
      %s53 = sphi 0, %s52
      %s67 = sphi 0, %s53
      %s71 = sphi 0, %s71
      %s73 = sphi 0, %s71
      %s74 = sphi 0, %s73
      %s88 = sphi 0, %s74
      %s94 = sphi 0, %s96
      %s97 = sphi 0, %s94
      %s98 = sphi 0, %s97
      %s114 = sphi 0, %s98
    $region4: #{tpu_custom_call.1} parent=1 // loop_header_branch
      %19 = sbr.rel (%p17) target = $region8
    $region5: #{tpu_custom_call.1} parent=1 // loop_body
      %s21 = ssub.s32 %s16, 1
      %s22 = ssub.s32 %s16, 2
      %s23 = sadd.s32 %s16, 1
      %s24 = ssub.s32 %s16, %s23
      %p25 = scmp.eq.s32.totalorder %s24, 0
      %s27 = sadd.s32 %s26, 1
      %s28 = scalar_select %p25, %s26, %s27
      %p31 = pneg %p25
      %p32 = scmp.eq.s32.totalorder %s16, 1
      %p33 = por %p31, %p32
      %p34 = scmp.ne.s32.totalorder %s26, %s29
      %p35 = scmp.eq.s32.totalorder %s16, 0
      %p36 = por %p34, %p35
      %p37 = scmp.ne.s32.totalorder %s26, %s29
      %p38 = scmp.eq.s32.totalorder %s21, 1
      %p39 = por %p37, %p38
      %p40 = scmp.ne.s32.totalorder %s29, %s30
      %p41 = scmp.eq.s32.totalorder %s21, 0
      %p42 = por %p40, %p41
      %p43 = scmp.ne.s32.totalorder %s29, %s30
      %p44 = scmp.eq.s32.totalorder %s22, 1
      %p45 = por %p43, %p44
      %p47 = scmp.ne.s32.totalorder %s30, %s46
      %p48 = scmp.eq.s32.totalorder %s22, 0
      %p49 = por %p47, %p48
      %s51 = sadd.s32 %s50, 1
      %p54 = scmp.eq.s32.totalorder %s16, 1
      %p55 = scmp.ne.s32.totalorder %s50, %s52
      %p56 = scmp.eq.s32.totalorder %s16, 0
      %p57 = por %p55, %p56
      %p58 = scmp.ne.s32.totalorder %s50, %s52
      %p59 = scmp.eq.s32.totalorder %s21, 1
      %p60 = por %p58, %p59
      %p61 = scmp.ne.s32.totalorder %s52, %s53
      %p62 = scmp.eq.s32.totalorder %s21, 0
      %p63 = por %p61, %p62
      %p64 = scmp.ne.s32.totalorder %s52, %s53
      %p65 = scmp.eq.s32.totalorder %s22, 1
      %p66 = por %p64, %p65
      %p68 = scmp.ne.s32.totalorder %s53, %s67
      %p69 = scmp.eq.s32.totalorder %s22, 0
      %p70 = por %p68, %p69
      %s72 = sadd.s32 %s71, 1
      %p75 = scmp.eq.s32.totalorder %s16, 1
      %p76 = scmp.ne.s32.totalorder %s71, %s73
      %p77 = scmp.eq.s32.totalorder %s16, 0
      %p78 = por %p76, %p77
      %p79 = scmp.ne.s32.totalorder %s71, %s73
      %p80 = scmp.eq.s32.totalorder %s21, 1
      %p81 = por %p79, %p80
      %p82 = scmp.ne.s32.totalorder %s73, %s74
      %p83 = scmp.eq.s32.totalorder %s21, 0
      %p84 = por %p82, %p83
      %p85 = scmp.ne.s32.totalorder %s73, %s74
      %p86 = scmp.eq.s32.totalorder %s22, 1
      %p87 = por %p85, %p86
      %p89 = scmp.ne.s32.totalorder %s74, %s88
      %p90 = scmp.eq.s32.totalorder %s22, 0
      %p91 = por %p89, %p90
      %s92 = ssub.s32 %s16, %s23
      %p93 = scmp.eq.s32.totalorder %s92, 0
      %s95 = sadd.s32 %s94, 1
      %s96 = scalar_select %p93, %s94, %s95
      %p99 = pneg %p93
      %p100 = scmp.eq.s32.totalorder %s16, 1
      %p101 = por %p99, %p100
      %p102 = scmp.ne.s32.totalorder %s94, %s97
      %p103 = scmp.eq.s32.totalorder %s16, 0
      %p104 = por %p102, %p103
      %p105 = scmp.ne.s32.totalorder %s94, %s97
      %p106 = scmp.eq.s32.totalorder %s21, 1
      %p107 = por %p105, %p106
      %p108 = scmp.ne.s32.totalorder %s97, %s98
      %p109 = scmp.eq.s32.totalorder %s21, 0
      %p110 = por %p108, %p109
      %p111 = scmp.ne.s32.totalorder %s97, %s98
      %p112 = scmp.eq.s32.totalorder %s22, 1
      %p113 = por %p111, %p112
      %p115 = scmp.ne.s32.totalorder %s98, %s114
      %p116 = scmp.eq.s32.totalorder %s22, 0
      %p117 = por %p115, %p116
      %p118 = scmp.le.s32.totalorder 1, %s16
      %p119 = scmp.lt.s32.totalorder %s16, 3
      %p120 = pnand %p118, %p119
      %p121 = pneg %p120
      // Predicated region
      $region9: #{tpu_custom_call.1} parent=5 // pred_check
        _
      $region10: #{tpu_custom_call.1} parent=5 // pred_check_branch
        %123 = sbr.rel (%p120) target = $region12
      $region11: #{tpu_custom_call.1} parent=5 // pred_region
        %s124 = ssub.s32 %s16, 1
        // Predicated region
        $region13: #{tpu_custom_call.1} parent=11 // pred_check
          %p125 = pneg %p63
        $region14: #{tpu_custom_call.1} parent=11 // pred_check_branch
          %127 = sbr.rel (%p125) target = $region16
        $region15: #{tpu_custom_call.1} parent=11 // pred_region
          %129 = vsyncadd [#allocation6], 0
          %s130 = sshll.u32 %s1, 4
          %s131 = int_to_ptr.hbm [resolvable:$true] %s130
          %s132 = sshll.u32 [#allocation5], 4
          %s133 = int_to_ptr.vmem [resolvable:$true] %s132
          %138 = dma.hbm_to_vmem [thread:$0]  %s131, 24576, %s133, [#allocation6], 256, 256, 16
        $region16: #{tpu_custom_call.1} parent=11 // pred_fallthru
          _
        // Predicated region
        $region17: #{tpu_custom_call.1} parent=11 // pred_check
          %p139 = pneg %p84
        $region18: #{tpu_custom_call.1} parent=11 // pred_check_branch
          %141 = sbr.rel (%p139) target = $region20
        $region19: #{tpu_custom_call.1} parent=11 // pred_region
          %143 = vsyncadd [#allocation6], 0
          %s145 = sshll.u32 %s2, 4
          %s146 = int_to_ptr.hbm [resolvable:$true] %s145
          %s147 = sshll.u32 [#allocation7], 4
          %s148 = int_to_ptr.vmem [resolvable:$true] %s147
          %150 = dma.hbm_to_vmem [thread:$0]  %s146, 128, %s148, [#allocation6]
        $region20: #{tpu_custom_call.1} parent=11 // pred_fallthru
          _
      $region12: #{tpu_custom_call.1} parent=5 // pred_fallthru
        _
      %p151 = scmp.lt.s32.totalorder %s16, 2
      // Predicated region
      $region21: #{tpu_custom_call.1} parent=5 // pred_check
        %p152 = pneg %p151
      $region22: #{tpu_custom_call.1} parent=5 // pred_check_branch
        %154 = sbr.rel (%p152) target = $region24
      $region23: #{tpu_custom_call.1} parent=5 // pred_region
        // Predicated region
        $region25: #{tpu_custom_call.1} parent=23 // pred_check
          %p155 = pneg %p36
        $region26: #{tpu_custom_call.1} parent=23 // pred_check_branch
          %157 = sbr.rel (%p155) target = $region28
        $region27: #{tpu_custom_call.1} parent=23 // pred_region
          %s158 = sand.u32 %s26, 1
          %s159 = scalar_lea.sflag [#allocation3], %s158
          %s160 = sand.u32 %s26, 1
          %s161 = smul.addr %s160, 24
          %s162 = scalar_lea.vmem [#allocation2], %s161
          %164 = vsyncadd %s159, 0
          %s165 = smul.addr %s16, 6
          %s166 = smul.addr %s165, 4
          %s167 = scalar_lea.hbm %s0, %s166
          %s169 = sshll.u32 %s167, 4
          %s170 = int_to_ptr.hbm [resolvable:$true] %s169
          %s171 = sshll.u32 %s162, 4
          %s172 = int_to_ptr.vmem [resolvable:$true] %s171
          %174 = dma.hbm_to_vmem [thread:$0]  %s170, 384, %s172, %s159
        $region28: #{tpu_custom_call.1} parent=23 // pred_fallthru
          _
      $region24: #{tpu_custom_call.1} parent=5 // pred_fallthru
        _
      %p175 = scmp.le.s32.totalorder 1, %s16
      %p176 = scmp.lt.s32.totalorder %s16, 3
      %p177 = pnand %p175, %p176
      %p178 = pneg %p177
      // Predicated region
      $region29: #{tpu_custom_call.1} parent=5 // pred_check
        _
      $region30: #{tpu_custom_call.1} parent=5 // pred_check_branch
        %180 = sbr.rel (%p177) target = $region32
      $region31: #{tpu_custom_call.1} parent=5 // pred_region
        %s181 = ssub.s32 %s16, 1
        %s182 = sand.u32 %s29, 1
        %s183 = scalar_lea.sflag [#allocation3], %s182
        %s184 = sand.u32 %s29, 1
        %s185 = smul.addr %s184, 24
        %s186 = scalar_lea.vmem [#allocation2], %s185
        // Predicated region
        $region33: #{tpu_custom_call.1} parent=31 // pred_check
          %p187 = pneg %p42
        $region34: #{tpu_custom_call.1} parent=31 // pred_check_branch
          %189 = sbr.rel (%p187) target = $region36
        $region35: #{tpu_custom_call.1} parent=31 // pred_region
          %191 = dma.done %s183, 384
        $region36: #{tpu_custom_call.1} parent=31 // pred_fallthru
          _
        // Predicated region
        $region37: #{tpu_custom_call.1} parent=31 // pred_check
          %p192 = pneg %p63
        $region38: #{tpu_custom_call.1} parent=31 // pred_check_branch
          %194 = sbr.rel (%p192) target = $region40
        $region39: #{tpu_custom_call.1} parent=31 // pred_region
          %196 = dma.done [#allocation6], 24576
        $region40: #{tpu_custom_call.1} parent=31 // pred_fallthru
          _
        // Predicated region
        $region41: #{tpu_custom_call.1} parent=31 // pred_check
          %p197 = pneg %p84
        $region42: #{tpu_custom_call.1} parent=31 // pred_check_branch
          %199 = sbr.rel (%p197) target = $region44
        $region43: #{tpu_custom_call.1} parent=31 // pred_region
          %201 = dma.done [#allocation6], 128
        $region44: #{tpu_custom_call.1} parent=31 // pred_fallthru
          _
        %s202 = sand.u32 %s29, 1
        %s203 = scalar_lea.sflag [#allocation3], %s202
        %s204 = sand.u32 %s29, 1
        %s205 = smul.addr %s204, 24
        %s206 = scalar_lea.vmem [#allocation2], %s205
        %p207 = pneg %p42
        %p208 = pneg %p39
        %p209 = pneg %p63
        %p210 = pneg %p60
        %p211 = pneg %p84
        %p212 = pneg %p81
        %p213 = pneg %p110
        %p214 = pneg %p107
        %s215 = sand.u32 %s97, 1
        %s216 = scalar_lea.sflag [#allocation4], %s215
        %s217 = sand.u32 %s97, 1
        %s218 = smul.addr %s217, 6
        %s219 = scalar_lea.vmem [#allocation8], %s218
        %v220 = vld [vmem:[%s186] sm:$0xff]
        %v221 = vld [vmem:[%s186 + $0x8] sm:$0xff]
        %v222 = vld [vmem:[%s186 + $0x10] sm:$0xff]
        %v223 = vld [vmem:[#allocation5] sm:$0xff]
        %v224 = vld [vmem:[#allocation5 + $0x8] sm:$0xff]
        %v225 = vld [vmem:[#allocation5 + $0x10] sm:$0xff]
        %v226 = vld [vmem:[#allocation5 + $0x18] sm:$0xff]
        %v227 = vld [vmem:[#allocation5 + $0x20] sm:$0xff]
        %v228 = vld [vmem:[#allocation5 + $0x28] sm:$0xff]
        %v229 = vld [vmem:[#allocation5 + $0x30] sm:$0xff]
        %v230 = vld [vmem:[#allocation5 + $0x38] sm:$0xff]
        %v231 = vld [vmem:[#allocation5 + $0x40] sm:$0xff]
        %v232 = vld [vmem:[#allocation5 + $0x48] sm:$0xff]
        %v233 = vld [vmem:[#allocation5 + $0x50] sm:$0xff]
        %v234 = vld [vmem:[#allocation5 + $0x58] sm:$0xff]
        %v235 = vld [vmem:[#allocation5 + $0x60] sm:$0xff]
        %v236 = vld [vmem:[#allocation5 + $0x68] sm:$0xff]
        %v237 = vld [vmem:[#allocation5 + $0x70] sm:$0xff]
        %v238 = vld [vmem:[#allocation5 + $0x78] sm:$0xff]
        %v239 = vld [vmem:[#allocation5 + $0x80] sm:$0xff]
        %v240 = vld [vmem:[#allocation5 + $0x88] sm:$0xff]
        %v241 = vld [vmem:[#allocation5 + $0x90] sm:$0xff]
        %v242 = vld [vmem:[#allocation5 + $0x98] sm:$0xff]
        %v243 = vld [vmem:[#allocation5 + $0xa0] sm:$0xff]
        %v244 = vld [vmem:[#allocation5 + $0xa8] sm:$0xff]
        %v245 = vld [vmem:[#allocation5 + $0xb0] sm:$0xff]
        %v246 = vld [vmem:[#allocation5 + $0xb8] sm:$0xff]
        %v247 = vld [vmem:[#allocation5 + $0xc0] sm:$0xff]
        %v248 = vld [vmem:[#allocation5 + $0xc8] sm:$0xff]
        %v249 = vld [vmem:[#allocation5 + $0xd0] sm:$0xff]
        %v250 = vld [vmem:[#allocation5 + $0xd8] sm:$0xff]
        %v251 = vld [vmem:[#allocation5 + $0xe0] sm:$0xff]
        %v252 = vld [vmem:[#allocation5 + $0xe8] sm:$0xff]
        %v253 = vld [vmem:[#allocation5 + $0xf0] sm:$0xff]
        %v254 = vld [vmem:[#allocation5 + $0xf8] sm:$0xff]
        %v255 = vld [vmem:[#allocation5 + $0x100] sm:$0xff]
        %v256 = vld [vmem:[#allocation5 + $0x108] sm:$0xff]
        %v257 = vld [vmem:[#allocation5 + $0x110] sm:$0xff]
        %v258 = vld [vmem:[#allocation5 + $0x118] sm:$0xff]
        %v259 = vld [vmem:[#allocation5 + $0x120] sm:$0xff]
        %v260 = vld [vmem:[#allocation5 + $0x128] sm:$0xff]
        %v261 = vld [vmem:[#allocation5 + $0x130] sm:$0xff]
        %v262 = vld [vmem:[#allocation5 + $0x138] sm:$0xff]
        %v263 = vld [vmem:[#allocation5 + $0x140] sm:$0xff]
        %v264 = vld [vmem:[#allocation5 + $0x148] sm:$0xff]
        %v265 = vld [vmem:[#allocation5 + $0x150] sm:$0xff]
        %v266 = vld [vmem:[#allocation5 + $0x158] sm:$0xff]
        %v267 = vld [vmem:[#allocation5 + $0x160] sm:$0xff]
        %v268 = vld [vmem:[#allocation5 + $0x168] sm:$0xff]
        %v269 = vld [vmem:[#allocation5 + $0x170] sm:$0xff]
        %v270 = vld [vmem:[#allocation5 + $0x178] sm:$0xff]
        %v271 = vld [vmem:[#allocation5 + $0x180] sm:$0xff]
        %v272 = vld [vmem:[#allocation5 + $0x188] sm:$0xff]
        %v273 = vld [vmem:[#allocation5 + $0x190] sm:$0xff]
        %v274 = vld [vmem:[#allocation5 + $0x198] sm:$0xff]
        %v275 = vld [vmem:[#allocation5 + $0x1a0] sm:$0xff]
        %v276 = vld [vmem:[#allocation5 + $0x1a8] sm:$0xff]
        %v277 = vld [vmem:[#allocation5 + $0x1b0] sm:$0xff]
        %v278 = vld [vmem:[#allocation5 + $0x1b8] sm:$0xff]
        %v279 = vld [vmem:[#allocation5 + $0x1c0] sm:$0xff]
        %v280 = vld [vmem:[#allocation5 + $0x1c8] sm:$0xff]
        %v281 = vld [vmem:[#allocation5 + $0x1d0] sm:$0xff]
        %v282 = vld [vmem:[#allocation5 + $0x1d8] sm:$0xff]
        %v283 = vld [vmem:[#allocation5 + $0x1e0] sm:$0xff]
        %v284 = vld [vmem:[#allocation5 + $0x1e8] sm:$0xff]
        %v285 = vld [vmem:[#allocation5 + $0x1f0] sm:$0xff]
        %v286 = vld [vmem:[#allocation5 + $0x1f8] sm:$0xff]
        %v287 = vld [vmem:[#allocation5 + $0x200] sm:$0xff]
        %v288 = vld [vmem:[#allocation5 + $0x208] sm:$0xff]
        %v289 = vld [vmem:[#allocation5 + $0x210] sm:$0xff]
        %v290 = vld [vmem:[#allocation5 + $0x218] sm:$0xff]
        %v291 = vld [vmem:[#allocation5 + $0x220] sm:$0xff]
        %v292 = vld [vmem:[#allocation5 + $0x228] sm:$0xff]
        %v293 = vld [vmem:[#allocation5 + $0x230] sm:$0xff]
        %v294 = vld [vmem:[#allocation5 + $0x238] sm:$0xff]
        %v295 = vld [vmem:[#allocation5 + $0x240] sm:$0xff]
        %v296 = vld [vmem:[#allocation5 + $0x248] sm:$0xff]
        %v297 = vld [vmem:[#allocation5 + $0x250] sm:$0xff]
        %v298 = vld [vmem:[#allocation5 + $0x258] sm:$0xff]
        %v299 = vld [vmem:[#allocation5 + $0x260] sm:$0xff]
        %v300 = vld [vmem:[#allocation5 + $0x268] sm:$0xff]
        %v301 = vld [vmem:[#allocation5 + $0x270] sm:$0xff]
        %v302 = vld [vmem:[#allocation5 + $0x278] sm:$0xff]
        %v303 = vld [vmem:[#allocation5 + $0x280] sm:$0xff]
        %v304 = vld [vmem:[#allocation5 + $0x288] sm:$0xff]
        %v305 = vld [vmem:[#allocation5 + $0x290] sm:$0xff]
        %v306 = vld [vmem:[#allocation5 + $0x298] sm:$0xff]
        %v307 = vld [vmem:[#allocation5 + $0x2a0] sm:$0xff]
        %v308 = vld [vmem:[#allocation5 + $0x2a8] sm:$0xff]
        %v309 = vld [vmem:[#allocation5 + $0x2b0] sm:$0xff]
        %v310 = vld [vmem:[#allocation5 + $0x2b8] sm:$0xff]
        %v311 = vld [vmem:[#allocation5 + $0x2c0] sm:$0xff]
        %v312 = vld [vmem:[#allocation5 + $0x2c8] sm:$0xff]
        %v313 = vld [vmem:[#allocation5 + $0x2d0] sm:$0xff]
        %v314 = vld [vmem:[#allocation5 + $0x2d8] sm:$0xff]
        %v315 = vld [vmem:[#allocation5 + $0x2e0] sm:$0xff]
        %v316 = vld [vmem:[#allocation5 + $0x2e8] sm:$0xff]
        %v317 = vld [vmem:[#allocation5 + $0x2f0] sm:$0xff]
        %v318 = vld [vmem:[#allocation5 + $0x2f8] sm:$0xff]
        %v319 = vld [vmem:[#allocation5 + $0x300] sm:$0xff]
        %v320 = vld [vmem:[#allocation5 + $0x308] sm:$0xff]
        %v321 = vld [vmem:[#allocation5 + $0x310] sm:$0xff]
        %v322 = vld [vmem:[#allocation5 + $0x318] sm:$0xff]
        %v323 = vld [vmem:[#allocation5 + $0x320] sm:$0xff]
        %v324 = vld [vmem:[#allocation5 + $0x328] sm:$0xff]
        %v325 = vld [vmem:[#allocation5 + $0x330] sm:$0xff]
        %v326 = vld [vmem:[#allocation5 + $0x338] sm:$0xff]
        %v327 = vld [vmem:[#allocation5 + $0x340] sm:$0xff]
        %v328 = vld [vmem:[#allocation5 + $0x348] sm:$0xff]
        %v329 = vld [vmem:[#allocation5 + $0x350] sm:$0xff]
        %v330 = vld [vmem:[#allocation5 + $0x358] sm:$0xff]
        %v331 = vld [vmem:[#allocation5 + $0x360] sm:$0xff]
        %v332 = vld [vmem:[#allocation5 + $0x368] sm:$0xff]
        %v333 = vld [vmem:[#allocation5 + $0x370] sm:$0xff]
        %v334 = vld [vmem:[#allocation5 + $0x378] sm:$0xff]
        %v335 = vld [vmem:[#allocation5 + $0x380] sm:$0xff]
        %v336 = vld [vmem:[#allocation5 + $0x388] sm:$0xff]
        %v337 = vld [vmem:[#allocation5 + $0x390] sm:$0xff]
        %v338 = vld [vmem:[#allocation5 + $0x398] sm:$0xff]
        %v339 = vld [vmem:[#allocation5 + $0x3a0] sm:$0xff]
        %v340 = vld [vmem:[#allocation5 + $0x3a8] sm:$0xff]
        %v341 = vld [vmem:[#allocation5 + $0x3b0] sm:$0xff]
        %v342 = vld [vmem:[#allocation5 + $0x3b8] sm:$0xff]
        %v343 = vld [vmem:[#allocation5 + $0x3c0] sm:$0xff]
        %v344 = vld [vmem:[#allocation5 + $0x3c8] sm:$0xff]
        %v345 = vld [vmem:[#allocation5 + $0x3d0] sm:$0xff]
        %v346 = vld [vmem:[#allocation5 + $0x3d8] sm:$0xff]
        %v347 = vld [vmem:[#allocation5 + $0x3e0] sm:$0xff]
        %v348 = vld [vmem:[#allocation5 + $0x3e8] sm:$0xff]
        %v349 = vld [vmem:[#allocation5 + $0x3f0] sm:$0xff]
        %v350 = vld [vmem:[#allocation5 + $0x3f8] sm:$0xff]
        %v351 = vld [vmem:[#allocation5 + $0x400] sm:$0xff]
        %v352 = vld [vmem:[#allocation5 + $0x408] sm:$0xff]
        %v353 = vld [vmem:[#allocation5 + $0x410] sm:$0xff]
        %v354 = vld [vmem:[#allocation5 + $0x418] sm:$0xff]
        %v355 = vld [vmem:[#allocation5 + $0x420] sm:$0xff]
        %v356 = vld [vmem:[#allocation5 + $0x428] sm:$0xff]
        %v357 = vld [vmem:[#allocation5 + $0x430] sm:$0xff]
        %v358 = vld [vmem:[#allocation5 + $0x438] sm:$0xff]
        %v359 = vld [vmem:[#allocation5 + $0x440] sm:$0xff]
        %v360 = vld [vmem:[#allocation5 + $0x448] sm:$0xff]
        %v361 = vld [vmem:[#allocation5 + $0x450] sm:$0xff]
        %v362 = vld [vmem:[#allocation5 + $0x458] sm:$0xff]
        %v363 = vld [vmem:[#allocation5 + $0x460] sm:$0xff]
        %v364 = vld [vmem:[#allocation5 + $0x468] sm:$0xff]
        %v365 = vld [vmem:[#allocation5 + $0x470] sm:$0xff]
        %v366 = vld [vmem:[#allocation5 + $0x478] sm:$0xff]
        %v367 = vld [vmem:[#allocation5 + $0x480] sm:$0xff]
        %v368 = vld [vmem:[#allocation5 + $0x488] sm:$0xff]
        %v369 = vld [vmem:[#allocation5 + $0x490] sm:$0xff]
        %v370 = vld [vmem:[#allocation5 + $0x498] sm:$0xff]
        %v371 = vld [vmem:[#allocation5 + $0x4a0] sm:$0xff]
        %v372 = vld [vmem:[#allocation5 + $0x4a8] sm:$0xff]
        %v373 = vld [vmem:[#allocation5 + $0x4b0] sm:$0xff]
        %v374 = vld [vmem:[#allocation5 + $0x4b8] sm:$0xff]
        %v375 = vld [vmem:[#allocation5 + $0x4c0] sm:$0xff]
        %v376 = vld [vmem:[#allocation5 + $0x4c8] sm:$0xff]
        %v377 = vld [vmem:[#allocation5 + $0x4d0] sm:$0xff]
        %v378 = vld [vmem:[#allocation5 + $0x4d8] sm:$0xff]
        %v379 = vld [vmem:[#allocation5 + $0x4e0] sm:$0xff]
        %v380 = vld [vmem:[#allocation5 + $0x4e8] sm:$0xff]
        %v381 = vld [vmem:[#allocation5 + $0x4f0] sm:$0xff]
        %v382 = vld [vmem:[#allocation5 + $0x4f8] sm:$0xff]
        %v383 = vld [vmem:[#allocation5 + $0x500] sm:$0xff]
        %v384 = vld [vmem:[#allocation5 + $0x508] sm:$0xff]
        %v385 = vld [vmem:[#allocation5 + $0x510] sm:$0xff]
        %v386 = vld [vmem:[#allocation5 + $0x518] sm:$0xff]
        %v387 = vld [vmem:[#allocation5 + $0x520] sm:$0xff]
        %v388 = vld [vmem:[#allocation5 + $0x528] sm:$0xff]
        %v389 = vld [vmem:[#allocation5 + $0x530] sm:$0xff]
        %v390 = vld [vmem:[#allocation5 + $0x538] sm:$0xff]
        %v391 = vld [vmem:[#allocation5 + $0x540] sm:$0xff]
        %v392 = vld [vmem:[#allocation5 + $0x548] sm:$0xff]
        %v393 = vld [vmem:[#allocation5 + $0x550] sm:$0xff]
        %v394 = vld [vmem:[#allocation5 + $0x558] sm:$0xff]
        %v395 = vld [vmem:[#allocation5 + $0x560] sm:$0xff]
        %v396 = vld [vmem:[#allocation5 + $0x568] sm:$0xff]
        %v397 = vld [vmem:[#allocation5 + $0x570] sm:$0xff]
        %v398 = vld [vmem:[#allocation5 + $0x578] sm:$0xff]
        %v399 = vld [vmem:[#allocation5 + $0x580] sm:$0xff]
        %v400 = vld [vmem:[#allocation5 + $0x588] sm:$0xff]
        %v401 = vld [vmem:[#allocation5 + $0x590] sm:$0xff]
        %v402 = vld [vmem:[#allocation5 + $0x598] sm:$0xff]
        %v403 = vld [vmem:[#allocation5 + $0x5a0] sm:$0xff]
        %v404 = vld [vmem:[#allocation5 + $0x5a8] sm:$0xff]
        %v405 = vld [vmem:[#allocation5 + $0x5b0] sm:$0xff]
        %v406 = vld [vmem:[#allocation5 + $0x5b8] sm:$0xff]
        %v407 = vld [vmem:[#allocation5 + $0x5c0] sm:$0xff]
        %v408 = vld [vmem:[#allocation5 + $0x5c8] sm:$0xff]
        %v409 = vld [vmem:[#allocation5 + $0x5d0] sm:$0xff]
        %v410 = vld [vmem:[#allocation5 + $0x5d8] sm:$0xff]
        %v411 = vld [vmem:[#allocation5 + $0x5e0] sm:$0xff]
        %v412 = vld [vmem:[#allocation5 + $0x5e8] sm:$0xff]
        %v413 = vld [vmem:[#allocation5 + $0x5f0] sm:$0xff]
        %v414 = vld [vmem:[#allocation5 + $0x5f8] sm:$0xff]
        %v415 = vld [vmem:[#allocation7] ss:$2 sm:$0xf]
        %v417 = vperm.slane %v415, 0
        %v418 = vperm.slane %v415, 1
        %v419 = vperm.slane %v415, 2
        %v420 = vperm.slane %v415, 3
        %v428 = vunpack.c.l.b16 %v220
        %v429 = vunpack.c.h.b16 %v220
        %v430 = vunpack.c.l.b16 %v221
        %v431 = vunpack.c.h.b16 %v221
        %v432 = vunpack.c.l.b16 %v222
        %v433 = vunpack.c.h.b16 %v222
        %v434 = vpack.c.b16 %v428, %v428
        %v435 = vpack.c.b16 %v429, %v429
        %v436 = vpack.c.b16 %v430, %v430
        %v437 = vpack.c.b16 %v431, %v431
        %v438 = vpack.c.b16 %v432, %v432
        %v439 = vpack.c.b16 %v433, %v433
        %v638 = vunpack.c.l.b16 %v223
        %v639 = vunpack.c.h.b16 %v223
        %v640 = vunpack.c.l.b16 %v224
        %v641 = vunpack.c.h.b16 %v224
        %v642 = vunpack.c.l.b16 %v225
        %v643 = vunpack.c.h.b16 %v225
        %v644 = vunpack.c.l.b16 %v226
        %v645 = vunpack.c.h.b16 %v226
        %v646 = vunpack.c.l.b16 %v227
        %v647 = vunpack.c.h.b16 %v227
        %v648 = vunpack.c.l.b16 %v228
        %v649 = vunpack.c.h.b16 %v228
        %v650 = vunpack.c.l.b16 %v229
        %v651 = vunpack.c.h.b16 %v229
        %v652 = vunpack.c.l.b16 %v230
        %v653 = vunpack.c.h.b16 %v230
        %v654 = vunpack.c.l.b16 %v231
        %v655 = vunpack.c.h.b16 %v231
        %v656 = vunpack.c.l.b16 %v232
        %v657 = vunpack.c.h.b16 %v232
        %v658 = vunpack.c.l.b16 %v233
        %v659 = vunpack.c.h.b16 %v233
        %v660 = vunpack.c.l.b16 %v234
        %v661 = vunpack.c.h.b16 %v234
        %v662 = vunpack.c.l.b16 %v235
        %v663 = vunpack.c.h.b16 %v235
        %v664 = vunpack.c.l.b16 %v236
        %v665 = vunpack.c.h.b16 %v236
        %v666 = vunpack.c.l.b16 %v237
        %v667 = vunpack.c.h.b16 %v237
        %v668 = vunpack.c.l.b16 %v238
        %v669 = vunpack.c.h.b16 %v238
        %v670 = vunpack.c.l.b16 %v239
        %v671 = vunpack.c.h.b16 %v239
        %v672 = vunpack.c.l.b16 %v240
        %v673 = vunpack.c.h.b16 %v240
        %v674 = vunpack.c.l.b16 %v241
        %v675 = vunpack.c.h.b16 %v241
        %v676 = vunpack.c.l.b16 %v242
        %v677 = vunpack.c.h.b16 %v242
        %v678 = vunpack.c.l.b16 %v243
        %v679 = vunpack.c.h.b16 %v243
        %v680 = vunpack.c.l.b16 %v244
        %v681 = vunpack.c.h.b16 %v244
        %v682 = vunpack.c.l.b16 %v245
        %v683 = vunpack.c.h.b16 %v245
        %v684 = vunpack.c.l.b16 %v246
        %v685 = vunpack.c.h.b16 %v246
        %v686 = vunpack.c.l.b16 %v247
        %v687 = vunpack.c.h.b16 %v247
        %v688 = vunpack.c.l.b16 %v248
        %v689 = vunpack.c.h.b16 %v248
        %v690 = vunpack.c.l.b16 %v249
        %v691 = vunpack.c.h.b16 %v249
        %v692 = vunpack.c.l.b16 %v250
        %v693 = vunpack.c.h.b16 %v250
        %v694 = vunpack.c.l.b16 %v251
        %v695 = vunpack.c.h.b16 %v251
        %v696 = vunpack.c.l.b16 %v252
        %v697 = vunpack.c.h.b16 %v252
        %v698 = vunpack.c.l.b16 %v253
        %v699 = vunpack.c.h.b16 %v253
        %v700 = vunpack.c.l.b16 %v254
        %v701 = vunpack.c.h.b16 %v254
        %v702 = vunpack.c.l.b16 %v255
        %v703 = vunpack.c.h.b16 %v255
        %v704 = vunpack.c.l.b16 %v256
        %v705 = vunpack.c.h.b16 %v256
        %v706 = vunpack.c.l.b16 %v257
        %v707 = vunpack.c.h.b16 %v257
        %v708 = vunpack.c.l.b16 %v258
        %v709 = vunpack.c.h.b16 %v258
        %v710 = vunpack.c.l.b16 %v259
        %v711 = vunpack.c.h.b16 %v259
        %v712 = vunpack.c.l.b16 %v260
        %v713 = vunpack.c.h.b16 %v260
        %v714 = vunpack.c.l.b16 %v261
        %v715 = vunpack.c.h.b16 %v261
        %v716 = vunpack.c.l.b16 %v262
        %v717 = vunpack.c.h.b16 %v262
        %v718 = vunpack.c.l.b16 %v263
        %v719 = vunpack.c.h.b16 %v263
        %v720 = vunpack.c.l.b16 %v264
        %v721 = vunpack.c.h.b16 %v264
        %v722 = vunpack.c.l.b16 %v265
        %v723 = vunpack.c.h.b16 %v265
        %v724 = vunpack.c.l.b16 %v266
        %v725 = vunpack.c.h.b16 %v266
        %v726 = vunpack.c.l.b16 %v267
        %v727 = vunpack.c.h.b16 %v267
        %v728 = vunpack.c.l.b16 %v268
        %v729 = vunpack.c.h.b16 %v268
        %v730 = vunpack.c.l.b16 %v269
        %v731 = vunpack.c.h.b16 %v269
        %v732 = vunpack.c.l.b16 %v270
        %v733 = vunpack.c.h.b16 %v270
        %v734 = vunpack.c.l.b16 %v271
        %v735 = vunpack.c.h.b16 %v271
        %v736 = vunpack.c.l.b16 %v272
        %v737 = vunpack.c.h.b16 %v272
        %v738 = vunpack.c.l.b16 %v273
        %v739 = vunpack.c.h.b16 %v273
        %v740 = vunpack.c.l.b16 %v274
        %v741 = vunpack.c.h.b16 %v274
        %v742 = vunpack.c.l.b16 %v275
        %v743 = vunpack.c.h.b16 %v275
        %v744 = vunpack.c.l.b16 %v276
        %v745 = vunpack.c.h.b16 %v276
        %v746 = vunpack.c.l.b16 %v277
        %v747 = vunpack.c.h.b16 %v277
        %v748 = vunpack.c.l.b16 %v278
        %v749 = vunpack.c.h.b16 %v278
        %v750 = vunpack.c.l.b16 %v279
        %v751 = vunpack.c.h.b16 %v279
        %v752 = vunpack.c.l.b16 %v280
        %v753 = vunpack.c.h.b16 %v280
        %v754 = vunpack.c.l.b16 %v281
        %v755 = vunpack.c.h.b16 %v281
        %v756 = vunpack.c.l.b16 %v282
        %v757 = vunpack.c.h.b16 %v282
        %v758 = vunpack.c.l.b16 %v283
        %v759 = vunpack.c.h.b16 %v283
        %v760 = vunpack.c.l.b16 %v284
        %v761 = vunpack.c.h.b16 %v284
        %v762 = vunpack.c.l.b16 %v285
        %v763 = vunpack.c.h.b16 %v285
        %v764 = vunpack.c.l.b16 %v286
        %v765 = vunpack.c.h.b16 %v286
        %v766 = vunpack.c.l.b16 %v287
        %v767 = vunpack.c.h.b16 %v287
        %v768 = vunpack.c.l.b16 %v288
        %v769 = vunpack.c.h.b16 %v288
        %v770 = vunpack.c.l.b16 %v289
        %v771 = vunpack.c.h.b16 %v289
        %v772 = vunpack.c.l.b16 %v290
        %v773 = vunpack.c.h.b16 %v290
        %v774 = vunpack.c.l.b16 %v291
        %v775 = vunpack.c.h.b16 %v291
        %v776 = vunpack.c.l.b16 %v292
        %v777 = vunpack.c.h.b16 %v292
        %v778 = vunpack.c.l.b16 %v293
        %v779 = vunpack.c.h.b16 %v293
        %v780 = vunpack.c.l.b16 %v294
        %v781 = vunpack.c.h.b16 %v294
        %v782 = vunpack.c.l.b16 %v295
        %v783 = vunpack.c.h.b16 %v295
        %v784 = vunpack.c.l.b16 %v296
        %v785 = vunpack.c.h.b16 %v296
        %v786 = vunpack.c.l.b16 %v297
        %v787 = vunpack.c.h.b16 %v297
        %v788 = vunpack.c.l.b16 %v298
        %v789 = vunpack.c.h.b16 %v298
        %v790 = vunpack.c.l.b16 %v299
        %v791 = vunpack.c.h.b16 %v299
        %v792 = vunpack.c.l.b16 %v300
        %v793 = vunpack.c.h.b16 %v300
        %v794 = vunpack.c.l.b16 %v301
        %v795 = vunpack.c.h.b16 %v301
        %v796 = vunpack.c.l.b16 %v302
        %v797 = vunpack.c.h.b16 %v302
        %v798 = vunpack.c.l.b16 %v303
        %v799 = vunpack.c.h.b16 %v303
        %v800 = vunpack.c.l.b16 %v304
        %v801 = vunpack.c.h.b16 %v304
        %v802 = vunpack.c.l.b16 %v305
        %v803 = vunpack.c.h.b16 %v305
        %v804 = vunpack.c.l.b16 %v306
        %v805 = vunpack.c.h.b16 %v306
        %v806 = vunpack.c.l.b16 %v307
        %v807 = vunpack.c.h.b16 %v307
        %v808 = vunpack.c.l.b16 %v308
        %v809 = vunpack.c.h.b16 %v308
        %v810 = vunpack.c.l.b16 %v309
        %v811 = vunpack.c.h.b16 %v309
        %v812 = vunpack.c.l.b16 %v310
        %v813 = vunpack.c.h.b16 %v310
        %v814 = vunpack.c.l.b16 %v311
        %v815 = vunpack.c.h.b16 %v311
        %v816 = vunpack.c.l.b16 %v312
        %v817 = vunpack.c.h.b16 %v312
        %v818 = vunpack.c.l.b16 %v313
        %v819 = vunpack.c.h.b16 %v313
        %v820 = vunpack.c.l.b16 %v314
        %v821 = vunpack.c.h.b16 %v314
        %v822 = vunpack.c.l.b16 %v315
        %v823 = vunpack.c.h.b16 %v315
        %v824 = vunpack.c.l.b16 %v316
        %v825 = vunpack.c.h.b16 %v316
        %v826 = vunpack.c.l.b16 %v317
        %v827 = vunpack.c.h.b16 %v317
        %v828 = vunpack.c.l.b16 %v318
        %v829 = vunpack.c.h.b16 %v318
        %v830 = vunpack.c.l.b16 %v319
        %v831 = vunpack.c.h.b16 %v319
        %v832 = vunpack.c.l.b16 %v320
        %v833 = vunpack.c.h.b16 %v320
        %v834 = vunpack.c.l.b16 %v321
        %v835 = vunpack.c.h.b16 %v321
        %v836 = vunpack.c.l.b16 %v322
        %v837 = vunpack.c.h.b16 %v322
        %v838 = vunpack.c.l.b16 %v323
        %v839 = vunpack.c.h.b16 %v323
        %v840 = vunpack.c.l.b16 %v324
        %v841 = vunpack.c.h.b16 %v324
        %v842 = vunpack.c.l.b16 %v325
        %v843 = vunpack.c.h.b16 %v325
        %v844 = vunpack.c.l.b16 %v326
        %v845 = vunpack.c.h.b16 %v326
        %v846 = vunpack.c.l.b16 %v327
        %v847 = vunpack.c.h.b16 %v327
        %v848 = vunpack.c.l.b16 %v328
        %v849 = vunpack.c.h.b16 %v328
        %v850 = vunpack.c.l.b16 %v329
        %v851 = vunpack.c.h.b16 %v329
        %v852 = vunpack.c.l.b16 %v330
        %v853 = vunpack.c.h.b16 %v330
        %v854 = vunpack.c.l.b16 %v331
        %v855 = vunpack.c.h.b16 %v331
        %v856 = vunpack.c.l.b16 %v332
        %v857 = vunpack.c.h.b16 %v332
        %v858 = vunpack.c.l.b16 %v333
        %v859 = vunpack.c.h.b16 %v333
        %v860 = vunpack.c.l.b16 %v334
        %v861 = vunpack.c.h.b16 %v334
        %v862 = vunpack.c.l.b16 %v335
        %v863 = vunpack.c.h.b16 %v335
        %v864 = vunpack.c.l.b16 %v336
        %v865 = vunpack.c.h.b16 %v336
        %v866 = vunpack.c.l.b16 %v337
        %v867 = vunpack.c.h.b16 %v337
        %v868 = vunpack.c.l.b16 %v338
        %v869 = vunpack.c.h.b16 %v338
        %v870 = vunpack.c.l.b16 %v339
        %v871 = vunpack.c.h.b16 %v339
        %v872 = vunpack.c.l.b16 %v340
        %v873 = vunpack.c.h.b16 %v340
        %v874 = vunpack.c.l.b16 %v341
        %v875 = vunpack.c.h.b16 %v341
        %v876 = vunpack.c.l.b16 %v342
        %v877 = vunpack.c.h.b16 %v342
        %v878 = vunpack.c.l.b16 %v343
        %v879 = vunpack.c.h.b16 %v343
        %v880 = vunpack.c.l.b16 %v344
        %v881 = vunpack.c.h.b16 %v344
        %v882 = vunpack.c.l.b16 %v345
        %v883 = vunpack.c.h.b16 %v345
        %v884 = vunpack.c.l.b16 %v346
        %v885 = vunpack.c.h.b16 %v346
        %v886 = vunpack.c.l.b16 %v347
        %v887 = vunpack.c.h.b16 %v347
        %v888 = vunpack.c.l.b16 %v348
        %v889 = vunpack.c.h.b16 %v348
        %v890 = vunpack.c.l.b16 %v349
        %v891 = vunpack.c.h.b16 %v349
        %v892 = vunpack.c.l.b16 %v350
        %v893 = vunpack.c.h.b16 %v350
        %v894 = vunpack.c.l.b16 %v351
        %v895 = vunpack.c.h.b16 %v351
        %v896 = vunpack.c.l.b16 %v352
        %v897 = vunpack.c.h.b16 %v352
        %v898 = vunpack.c.l.b16 %v353
        %v899 = vunpack.c.h.b16 %v353
        %v900 = vunpack.c.l.b16 %v354
        %v901 = vunpack.c.h.b16 %v354
        %v902 = vunpack.c.l.b16 %v355
        %v903 = vunpack.c.h.b16 %v355
        %v904 = vunpack.c.l.b16 %v356
        %v905 = vunpack.c.h.b16 %v356
        %v906 = vunpack.c.l.b16 %v357
        %v907 = vunpack.c.h.b16 %v357
        %v908 = vunpack.c.l.b16 %v358
        %v909 = vunpack.c.h.b16 %v358
        %v910 = vunpack.c.l.b16 %v359
        %v911 = vunpack.c.h.b16 %v359
        %v912 = vunpack.c.l.b16 %v360
        %v913 = vunpack.c.h.b16 %v360
        %v914 = vunpack.c.l.b16 %v361
        %v915 = vunpack.c.h.b16 %v361
        %v916 = vunpack.c.l.b16 %v362
        %v917 = vunpack.c.h.b16 %v362
        %v918 = vunpack.c.l.b16 %v363
        %v919 = vunpack.c.h.b16 %v363
        %v920 = vunpack.c.l.b16 %v364
        %v921 = vunpack.c.h.b16 %v364
        %v922 = vunpack.c.l.b16 %v365
        %v923 = vunpack.c.h.b16 %v365
        %v924 = vunpack.c.l.b16 %v366
        %v925 = vunpack.c.h.b16 %v366
        %v926 = vunpack.c.l.b16 %v367
        %v927 = vunpack.c.h.b16 %v367
        %v928 = vunpack.c.l.b16 %v368
        %v929 = vunpack.c.h.b16 %v368
        %v930 = vunpack.c.l.b16 %v369
        %v931 = vunpack.c.h.b16 %v369
        %v932 = vunpack.c.l.b16 %v370
        %v933 = vunpack.c.h.b16 %v370
        %v934 = vunpack.c.l.b16 %v371
        %v935 = vunpack.c.h.b16 %v371
        %v936 = vunpack.c.l.b16 %v372
        %v937 = vunpack.c.h.b16 %v372
        %v938 = vunpack.c.l.b16 %v373
        %v939 = vunpack.c.h.b16 %v373
        %v940 = vunpack.c.l.b16 %v374
        %v941 = vunpack.c.h.b16 %v374
        %v942 = vunpack.c.l.b16 %v375
        %v943 = vunpack.c.h.b16 %v375
        %v944 = vunpack.c.l.b16 %v376
        %v945 = vunpack.c.h.b16 %v376
        %v946 = vunpack.c.l.b16 %v377
        %v947 = vunpack.c.h.b16 %v377
        %v948 = vunpack.c.l.b16 %v378
        %v949 = vunpack.c.h.b16 %v378
        %v950 = vunpack.c.l.b16 %v379
        %v951 = vunpack.c.h.b16 %v379
        %v952 = vunpack.c.l.b16 %v380
        %v953 = vunpack.c.h.b16 %v380
        %v954 = vunpack.c.l.b16 %v381
        %v955 = vunpack.c.h.b16 %v381
        %v956 = vunpack.c.l.b16 %v382
        %v957 = vunpack.c.h.b16 %v382
        %v958 = vunpack.c.l.b16 %v383
        %v959 = vunpack.c.h.b16 %v383
        %v960 = vunpack.c.l.b16 %v384
        %v961 = vunpack.c.h.b16 %v384
        %v962 = vunpack.c.l.b16 %v385
        %v963 = vunpack.c.h.b16 %v385
        %v964 = vunpack.c.l.b16 %v386
        %v965 = vunpack.c.h.b16 %v386
        %v966 = vunpack.c.l.b16 %v387
        %v967 = vunpack.c.h.b16 %v387
        %v968 = vunpack.c.l.b16 %v388
        %v969 = vunpack.c.h.b16 %v388
        %v970 = vunpack.c.l.b16 %v389
        %v971 = vunpack.c.h.b16 %v389
        %v972 = vunpack.c.l.b16 %v390
        %v973 = vunpack.c.h.b16 %v390
        %v974 = vunpack.c.l.b16 %v391
        %v975 = vunpack.c.h.b16 %v391
        %v976 = vunpack.c.l.b16 %v392
        %v977 = vunpack.c.h.b16 %v392
        %v978 = vunpack.c.l.b16 %v393
        %v979 = vunpack.c.h.b16 %v393
        %v980 = vunpack.c.l.b16 %v394
        %v981 = vunpack.c.h.b16 %v394
        %v982 = vunpack.c.l.b16 %v395
        %v983 = vunpack.c.h.b16 %v395
        %v984 = vunpack.c.l.b16 %v396
        %v985 = vunpack.c.h.b16 %v396
        %v986 = vunpack.c.l.b16 %v397
        %v987 = vunpack.c.h.b16 %v397
        %v988 = vunpack.c.l.b16 %v398
        %v989 = vunpack.c.h.b16 %v398
        %v990 = vunpack.c.l.b16 %v399
        %v991 = vunpack.c.h.b16 %v399
        %v992 = vunpack.c.l.b16 %v400
        %v993 = vunpack.c.h.b16 %v400
        %v994 = vunpack.c.l.b16 %v401
        %v995 = vunpack.c.h.b16 %v401
        %v996 = vunpack.c.l.b16 %v402
        %v997 = vunpack.c.h.b16 %v402
        %v998 = vunpack.c.l.b16 %v403
        %v999 = vunpack.c.h.b16 %v403
        %v1000 = vunpack.c.l.b16 %v404
        %v1001 = vunpack.c.h.b16 %v404
        %v1002 = vunpack.c.l.b16 %v405
        %v1003 = vunpack.c.h.b16 %v405
        %v1004 = vunpack.c.l.b16 %v406
        %v1005 = vunpack.c.h.b16 %v406
        %v1006 = vunpack.c.l.b16 %v407
        %v1007 = vunpack.c.h.b16 %v407
        %v1008 = vunpack.c.l.b16 %v408
        %v1009 = vunpack.c.h.b16 %v408
        %v1010 = vunpack.c.l.b16 %v409
        %v1011 = vunpack.c.h.b16 %v409
        %v1012 = vunpack.c.l.b16 %v410
        %v1013 = vunpack.c.h.b16 %v410
        %v1014 = vunpack.c.l.b16 %v411
        %v1015 = vunpack.c.h.b16 %v411
        %v1016 = vunpack.c.l.b16 %v412
        %v1017 = vunpack.c.h.b16 %v412
        %v1018 = vunpack.c.l.b16 %v413
        %v1019 = vunpack.c.h.b16 %v413
        %v1020 = vunpack.c.l.b16 %v414
        %v1021 = vunpack.c.h.b16 %v414
        %v1022 = vpack.c.b16 %v642, %v638
        %v1023 = vpack.c.b16 %v643, %v639
        %v1024 = vpack.c.b16 %v644, %v640
        %v1025 = vpack.c.b16 %v645, %v641
        %v1026 = vpack.c.b16 %v650, %v646
        %v1027 = vpack.c.b16 %v651, %v647
        %v1028 = vpack.c.b16 %v652, %v648
        %v1029 = vpack.c.b16 %v653, %v649
        %v1030 = vpack.c.b16 %v658, %v654
        %v1031 = vpack.c.b16 %v659, %v655
        %v1032 = vpack.c.b16 %v660, %v656
        %v1033 = vpack.c.b16 %v661, %v657
        %v1034 = vpack.c.b16 %v666, %v662
        %v1035 = vpack.c.b16 %v667, %v663
        %v1036 = vpack.c.b16 %v668, %v664
        %v1037 = vpack.c.b16 %v669, %v665
        %v1038 = vpack.c.b16 %v674, %v670
        %v1039 = vpack.c.b16 %v675, %v671
        %v1040 = vpack.c.b16 %v676, %v672
        %v1041 = vpack.c.b16 %v677, %v673
        %v1042 = vpack.c.b16 %v682, %v678
        %v1043 = vpack.c.b16 %v683, %v679
        %v1044 = vpack.c.b16 %v684, %v680
        %v1045 = vpack.c.b16 %v685, %v681
        %v1046 = vpack.c.b16 %v690, %v686
        %v1047 = vpack.c.b16 %v691, %v687
        %v1048 = vpack.c.b16 %v692, %v688
        %v1049 = vpack.c.b16 %v693, %v689
        %v1050 = vpack.c.b16 %v698, %v694
        %v1051 = vpack.c.b16 %v699, %v695
        %v1052 = vpack.c.b16 %v700, %v696
        %v1053 = vpack.c.b16 %v701, %v697
        %v1054 = vpack.c.b16 %v706, %v702
        %v1055 = vpack.c.b16 %v707, %v703
        %v1056 = vpack.c.b16 %v708, %v704
        %v1057 = vpack.c.b16 %v709, %v705
        %v1058 = vpack.c.b16 %v714, %v710
        %v1059 = vpack.c.b16 %v715, %v711
        %v1060 = vpack.c.b16 %v716, %v712
        %v1061 = vpack.c.b16 %v717, %v713
        %v1062 = vpack.c.b16 %v722, %v718
        %v1063 = vpack.c.b16 %v723, %v719
        %v1064 = vpack.c.b16 %v724, %v720
        %v1065 = vpack.c.b16 %v725, %v721
        %v1066 = vpack.c.b16 %v730, %v726
        %v1067 = vpack.c.b16 %v731, %v727
        %v1068 = vpack.c.b16 %v732, %v728
        %v1069 = vpack.c.b16 %v733, %v729
        %v1070 = vpack.c.b16 %v738, %v734
        %v1071 = vpack.c.b16 %v739, %v735
        %v1072 = vpack.c.b16 %v740, %v736
        %v1073 = vpack.c.b16 %v741, %v737
        %v1074 = vpack.c.b16 %v746, %v742
        %v1075 = vpack.c.b16 %v747, %v743
        %v1076 = vpack.c.b16 %v748, %v744
        %v1077 = vpack.c.b16 %v749, %v745
        %v1078 = vpack.c.b16 %v754, %v750
        %v1079 = vpack.c.b16 %v755, %v751
        %v1080 = vpack.c.b16 %v756, %v752
        %v1081 = vpack.c.b16 %v757, %v753
        %v1082 = vpack.c.b16 %v762, %v758
        %v1083 = vpack.c.b16 %v763, %v759
        %v1084 = vpack.c.b16 %v764, %v760
        %v1085 = vpack.c.b16 %v765, %v761
        %v1086 = vpack.c.b16 %v770, %v766
        %v1087 = vpack.c.b16 %v771, %v767
        %v1088 = vpack.c.b16 %v772, %v768
        %v1089 = vpack.c.b16 %v773, %v769
        %v1090 = vpack.c.b16 %v778, %v774
        %v1091 = vpack.c.b16 %v779, %v775
        %v1092 = vpack.c.b16 %v780, %v776
        %v1093 = vpack.c.b16 %v781, %v777
        %v1094 = vpack.c.b16 %v786, %v782
        %v1095 = vpack.c.b16 %v787, %v783
        %v1096 = vpack.c.b16 %v788, %v784
        %v1097 = vpack.c.b16 %v789, %v785
        %v1098 = vpack.c.b16 %v794, %v790
        %v1099 = vpack.c.b16 %v795, %v791
        %v1100 = vpack.c.b16 %v796, %v792
        %v1101 = vpack.c.b16 %v797, %v793
        %v1102 = vpack.c.b16 %v802, %v798
        %v1103 = vpack.c.b16 %v803, %v799
        %v1104 = vpack.c.b16 %v804, %v800
        %v1105 = vpack.c.b16 %v805, %v801
        %v1106 = vpack.c.b16 %v810, %v806
        %v1107 = vpack.c.b16 %v811, %v807
        %v1108 = vpack.c.b16 %v812, %v808
        %v1109 = vpack.c.b16 %v813, %v809
        %v1110 = vpack.c.b16 %v818, %v814
        %v1111 = vpack.c.b16 %v819, %v815
        %v1112 = vpack.c.b16 %v820, %v816
        %v1113 = vpack.c.b16 %v821, %v817
        %v1114 = vpack.c.b16 %v826, %v822
        %v1115 = vpack.c.b16 %v827, %v823
        %v1116 = vpack.c.b16 %v828, %v824
        %v1117 = vpack.c.b16 %v829, %v825
        %v1118 = vpack.c.b16 %v834, %v830
        %v1119 = vpack.c.b16 %v835, %v831
        %v1120 = vpack.c.b16 %v836, %v832
        %v1121 = vpack.c.b16 %v837, %v833
        %v1122 = vpack.c.b16 %v842, %v838
        %v1123 = vpack.c.b16 %v843, %v839
        %v1124 = vpack.c.b16 %v844, %v840
        %v1125 = vpack.c.b16 %v845, %v841
        %v1126 = vpack.c.b16 %v850, %v846
        %v1127 = vpack.c.b16 %v851, %v847
        %v1128 = vpack.c.b16 %v852, %v848
        %v1129 = vpack.c.b16 %v853, %v849
        %v1130 = vpack.c.b16 %v858, %v854
        %v1131 = vpack.c.b16 %v859, %v855
        %v1132 = vpack.c.b16 %v860, %v856
        %v1133 = vpack.c.b16 %v861, %v857
        %v1134 = vpack.c.b16 %v866, %v862
        %v1135 = vpack.c.b16 %v867, %v863
        %v1136 = vpack.c.b16 %v868, %v864
        %v1137 = vpack.c.b16 %v869, %v865
        %v1138 = vpack.c.b16 %v874, %v870
        %v1139 = vpack.c.b16 %v875, %v871
        %v1140 = vpack.c.b16 %v876, %v872
        %v1141 = vpack.c.b16 %v877, %v873
        %v1142 = vpack.c.b16 %v882, %v878
        %v1143 = vpack.c.b16 %v883, %v879
        %v1144 = vpack.c.b16 %v884, %v880
        %v1145 = vpack.c.b16 %v885, %v881
        %v1146 = vpack.c.b16 %v890, %v886
        %v1147 = vpack.c.b16 %v891, %v887
        %v1148 = vpack.c.b16 %v892, %v888
        %v1149 = vpack.c.b16 %v893, %v889
        %v1150 = vpack.c.b16 %v898, %v894
        %v1151 = vpack.c.b16 %v899, %v895
        %v1152 = vpack.c.b16 %v900, %v896
        %v1153 = vpack.c.b16 %v901, %v897
        %v1154 = vpack.c.b16 %v906, %v902
        %v1155 = vpack.c.b16 %v907, %v903
        %v1156 = vpack.c.b16 %v908, %v904
        %v1157 = vpack.c.b16 %v909, %v905
        %v1158 = vpack.c.b16 %v914, %v910
        %v1159 = vpack.c.b16 %v915, %v911
        %v1160 = vpack.c.b16 %v916, %v912
        %v1161 = vpack.c.b16 %v917, %v913
        %v1162 = vpack.c.b16 %v922, %v918
        %v1163 = vpack.c.b16 %v923, %v919
        %v1164 = vpack.c.b16 %v924, %v920
        %v1165 = vpack.c.b16 %v925, %v921
        %v1166 = vpack.c.b16 %v930, %v926
        %v1167 = vpack.c.b16 %v931, %v927
        %v1168 = vpack.c.b16 %v932, %v928
        %v1169 = vpack.c.b16 %v933, %v929
        %v1170 = vpack.c.b16 %v938, %v934
        %v1171 = vpack.c.b16 %v939, %v935
        %v1172 = vpack.c.b16 %v940, %v936
        %v1173 = vpack.c.b16 %v941, %v937
        %v1174 = vpack.c.b16 %v946, %v942
        %v1175 = vpack.c.b16 %v947, %v943
        %v1176 = vpack.c.b16 %v948, %v944
        %v1177 = vpack.c.b16 %v949, %v945
        %v1178 = vpack.c.b16 %v954, %v950
        %v1179 = vpack.c.b16 %v955, %v951
        %v1180 = vpack.c.b16 %v956, %v952
        %v1181 = vpack.c.b16 %v957, %v953
        %v1182 = vpack.c.b16 %v962, %v958
        %v1183 = vpack.c.b16 %v963, %v959
        %v1184 = vpack.c.b16 %v964, %v960
        %v1185 = vpack.c.b16 %v965, %v961
        %v1186 = vpack.c.b16 %v970, %v966
        %v1187 = vpack.c.b16 %v971, %v967
        %v1188 = vpack.c.b16 %v972, %v968
        %v1189 = vpack.c.b16 %v973, %v969
        %v1190 = vpack.c.b16 %v978, %v974
        %v1191 = vpack.c.b16 %v979, %v975
        %v1192 = vpack.c.b16 %v980, %v976
        %v1193 = vpack.c.b16 %v981, %v977
        %v1194 = vpack.c.b16 %v986, %v982
        %v1195 = vpack.c.b16 %v987, %v983
        %v1196 = vpack.c.b16 %v988, %v984
        %v1197 = vpack.c.b16 %v989, %v985
        %v1198 = vpack.c.b16 %v994, %v990
        %v1199 = vpack.c.b16 %v995, %v991
        %v1200 = vpack.c.b16 %v996, %v992
        %v1201 = vpack.c.b16 %v997, %v993
        %v1202 = vpack.c.b16 %v1002, %v998
        %v1203 = vpack.c.b16 %v1003, %v999
        %v1204 = vpack.c.b16 %v1004, %v1000
        %v1205 = vpack.c.b16 %v1005, %v1001
        %v1206 = vpack.c.b16 %v1010, %v1006
        %v1207 = vpack.c.b16 %v1011, %v1007
        %v1208 = vpack.c.b16 %v1012, %v1008
        %v1209 = vpack.c.b16 %v1013, %v1009
        %v1210 = vpack.c.b16 %v1018, %v1014
        %v1211 = vpack.c.b16 %v1019, %v1015
        %v1212 = vpack.c.b16 %v1020, %v1016
        %v1213 = vpack.c.b16 %v1021, %v1017
        %1406 = vmatpush.bf16.msra.mxu0 %v1050
        %1407 = vmatpush.bf16.msra.mxu0 %v1046
        %1408 = vmatpush.bf16.msra.mxu0 %v1042
        %1409 = vmatpush.bf16.msra.mxu0 %v1038
        %1410 = vmatpush.bf16.msra.mxu0 %v1034
        %1411 = vmatpush.bf16.msra.mxu0 %v1030
        %1412 = vmatpush.bf16.msra.mxu0 %v1026
        %1413 = vmatpush.bf16.msra.mxu0 %v1022
        %1414 = vmatmul.bf16.gmra.mxu0 %v434
        %v1415 = vpop.f32.mrf.mxu0
        %v1416 = vadd.f32 %v417, %v1415
        %v1417 = vpop.f32.mrf.mxu0
        %1418 = vdwg.mxu0
        %1419 = vmatpush.bf16.msra.mxu0 %v1082
        %1420 = vmatpush.bf16.msra.mxu0 %v1078
        %1421 = vmatpush.bf16.msra.mxu0 %v1074
        %1422 = vmatpush.bf16.msra.mxu0 %v1070
        %1423 = vmatpush.bf16.msra.mxu0 %v1066
        %1424 = vmatpush.bf16.msra.mxu0 %v1062
        %1425 = vmatpush.bf16.msra.mxu0 %v1058
        %1426 = vmatpush.bf16.msra.mxu0 %v1054
        %1427 = vmatmul.bf16.gmra.mxu0 %v435
        %v1428 = vpop.f32.mrf.mxu0
        %v1429 = vadd.f32 %v1416, %v1428
        %v1430 = vpop.f32.mrf.mxu0
        %1431 = vdwg.mxu0
        %1432 = vmatpush.bf16.msra.mxu0 %v1114
        %1433 = vmatpush.bf16.msra.mxu0 %v1110
        %1434 = vmatpush.bf16.msra.mxu0 %v1106
        %1435 = vmatpush.bf16.msra.mxu0 %v1102
        %1436 = vmatpush.bf16.msra.mxu0 %v1098
        %1437 = vmatpush.bf16.msra.mxu0 %v1094
        %1438 = vmatpush.bf16.msra.mxu0 %v1090
        %1439 = vmatpush.bf16.msra.mxu0 %v1086
        %1440 = vmatmul.bf16.gmra.mxu0 %v436
        %v1441 = vpop.f32.mrf.mxu0
        %v1442 = vadd.f32 %v1429, %v1441
        %v1443 = vpop.f32.mrf.mxu0
        %1444 = vdwg.mxu0
        %1445 = vmatpush.bf16.msra.mxu0 %v1146
        %1446 = vmatpush.bf16.msra.mxu0 %v1142
        %1447 = vmatpush.bf16.msra.mxu0 %v1138
        %1448 = vmatpush.bf16.msra.mxu0 %v1134
        %1449 = vmatpush.bf16.msra.mxu0 %v1130
        %1450 = vmatpush.bf16.msra.mxu0 %v1126
        %1451 = vmatpush.bf16.msra.mxu0 %v1122
        %1452 = vmatpush.bf16.msra.mxu0 %v1118
        %1453 = vmatmul.bf16.gmra.mxu0 %v437
        %v1454 = vpop.f32.mrf.mxu0
        %v1455 = vadd.f32 %v1442, %v1454
        %v1456 = vpop.f32.mrf.mxu0
        %1457 = vdwg.mxu0
        %1458 = vmatpush.bf16.msra.mxu0 %v1178
        %1459 = vmatpush.bf16.msra.mxu0 %v1174
        %1460 = vmatpush.bf16.msra.mxu0 %v1170
        %1461 = vmatpush.bf16.msra.mxu0 %v1166
        %1462 = vmatpush.bf16.msra.mxu0 %v1162
        %1463 = vmatpush.bf16.msra.mxu0 %v1158
        %1464 = vmatpush.bf16.msra.mxu0 %v1154
        %1465 = vmatpush.bf16.msra.mxu0 %v1150
        %1466 = vmatmul.bf16.gmra.mxu0 %v438
        %v1467 = vpop.f32.mrf.mxu0
        %v1468 = vadd.f32 %v1455, %v1467
        %v1469 = vpop.f32.mrf.mxu0
        %1470 = vdwg.mxu0
        %1471 = vmatpush.bf16.msra.mxu0 %v1210
        %1472 = vmatpush.bf16.msra.mxu0 %v1206
        %1473 = vmatpush.bf16.msra.mxu0 %v1202
        %1474 = vmatpush.bf16.msra.mxu0 %v1198
        %1475 = vmatpush.bf16.msra.mxu0 %v1194
        %1476 = vmatpush.bf16.msra.mxu0 %v1190
        %1477 = vmatpush.bf16.msra.mxu0 %v1186
        %1478 = vmatpush.bf16.msra.mxu0 %v1182
        %1479 = vmatmul.bf16.gmra.mxu0 %v439
        %v1480 = vpop.f32.mrf.mxu0
        %v1481 = vadd.f32 %v1468, %v1480
        %v1482 = vpop.f32.mrf.mxu0
        %1483 = vdwg.mxu0
        %1484 = vmatpush.bf16.msra.mxu0 %v1051
        %1485 = vmatpush.bf16.msra.mxu0 %v1047
        %1486 = vmatpush.bf16.msra.mxu0 %v1043
        %1487 = vmatpush.bf16.msra.mxu0 %v1039
        %1488 = vmatpush.bf16.msra.mxu0 %v1035
        %1489 = vmatpush.bf16.msra.mxu0 %v1031
        %1490 = vmatpush.bf16.msra.mxu0 %v1027
        %1491 = vmatpush.bf16.msra.mxu0 %v1023
        %1492 = vmatmul.bf16.gmra.mxu0 %v434
        %v1493 = vpop.f32.mrf.mxu0
        %v1494 = vadd.f32 %v418, %v1493
        %v1495 = vpop.f32.mrf.mxu0
        %1496 = vdwg.mxu0
        %1497 = vmatpush.bf16.msra.mxu0 %v1083
        %1498 = vmatpush.bf16.msra.mxu0 %v1079
        %1499 = vmatpush.bf16.msra.mxu0 %v1075
        %1500 = vmatpush.bf16.msra.mxu0 %v1071
        %1501 = vmatpush.bf16.msra.mxu0 %v1067
        %1502 = vmatpush.bf16.msra.mxu0 %v1063
        %1503 = vmatpush.bf16.msra.mxu0 %v1059
        %1504 = vmatpush.bf16.msra.mxu0 %v1055
        %1505 = vmatmul.bf16.gmra.mxu0 %v435
        %v1506 = vpop.f32.mrf.mxu0
        %v1507 = vadd.f32 %v1494, %v1506
        %v1508 = vpop.f32.mrf.mxu0
        %1509 = vdwg.mxu0
        %1510 = vmatpush.bf16.msra.mxu0 %v1115
        %1511 = vmatpush.bf16.msra.mxu0 %v1111
        %1512 = vmatpush.bf16.msra.mxu0 %v1107
        %1513 = vmatpush.bf16.msra.mxu0 %v1103
        %1514 = vmatpush.bf16.msra.mxu0 %v1099
        %1515 = vmatpush.bf16.msra.mxu0 %v1095
        %1516 = vmatpush.bf16.msra.mxu0 %v1091
        %1517 = vmatpush.bf16.msra.mxu0 %v1087
        %1518 = vmatmul.bf16.gmra.mxu0 %v436
        %v1519 = vpop.f32.mrf.mxu0
        %v1520 = vadd.f32 %v1507, %v1519
        %v1521 = vpop.f32.mrf.mxu0
        %1522 = vdwg.mxu0
        %1523 = vmatpush.bf16.msra.mxu0 %v1147
        %1524 = vmatpush.bf16.msra.mxu0 %v1143
        %1525 = vmatpush.bf16.msra.mxu0 %v1139
        %1526 = vmatpush.bf16.msra.mxu0 %v1135
        %1527 = vmatpush.bf16.msra.mxu0 %v1131
        %1528 = vmatpush.bf16.msra.mxu0 %v1127
        %1529 = vmatpush.bf16.msra.mxu0 %v1123
        %1530 = vmatpush.bf16.msra.mxu0 %v1119
        %1531 = vmatmul.bf16.gmra.mxu0 %v437
        %v1532 = vpop.f32.mrf.mxu0
        %v1533 = vadd.f32 %v1520, %v1532
        %v1534 = vpop.f32.mrf.mxu0
        %1535 = vdwg.mxu0
        %1536 = vmatpush.bf16.msra.mxu0 %v1179
        %1537 = vmatpush.bf16.msra.mxu0 %v1175
        %1538 = vmatpush.bf16.msra.mxu0 %v1171
        %1539 = vmatpush.bf16.msra.mxu0 %v1167
        %1540 = vmatpush.bf16.msra.mxu0 %v1163
        %1541 = vmatpush.bf16.msra.mxu0 %v1159
        %1542 = vmatpush.bf16.msra.mxu0 %v1155
        %1543 = vmatpush.bf16.msra.mxu0 %v1151
        %1544 = vmatmul.bf16.gmra.mxu0 %v438
        %v1545 = vpop.f32.mrf.mxu0
        %v1546 = vadd.f32 %v1533, %v1545
        %v1547 = vpop.f32.mrf.mxu0
        %1548 = vdwg.mxu0
        %1549 = vmatpush.bf16.msra.mxu0 %v1211
        %1550 = vmatpush.bf16.msra.mxu0 %v1207
        %1551 = vmatpush.bf16.msra.mxu0 %v1203
        %1552 = vmatpush.bf16.msra.mxu0 %v1199
        %1553 = vmatpush.bf16.msra.mxu0 %v1195
        %1554 = vmatpush.bf16.msra.mxu0 %v1191
        %1555 = vmatpush.bf16.msra.mxu0 %v1187
        %1556 = vmatpush.bf16.msra.mxu0 %v1183
        %1557 = vmatmul.bf16.gmra.mxu0 %v439
        %v1558 = vpop.f32.mrf.mxu0
        %v1559 = vadd.f32 %v1546, %v1558
        %v1560 = vpop.f32.mrf.mxu0
        %1561 = vdwg.mxu0
        %1562 = vmatpush.bf16.msra.mxu0 %v1052
        %1563 = vmatpush.bf16.msra.mxu0 %v1048
        %1564 = vmatpush.bf16.msra.mxu0 %v1044
        %1565 = vmatpush.bf16.msra.mxu0 %v1040
        %1566 = vmatpush.bf16.msra.mxu0 %v1036
        %1567 = vmatpush.bf16.msra.mxu0 %v1032
        %1568 = vmatpush.bf16.msra.mxu0 %v1028
        %1569 = vmatpush.bf16.msra.mxu0 %v1024
        %1570 = vmatmul.bf16.gmra.mxu0 %v434
        %v1571 = vpop.f32.mrf.mxu0
        %v1572 = vadd.f32 %v419, %v1571
        %v1573 = vpop.f32.mrf.mxu0
        %1574 = vdwg.mxu0
        %1575 = vmatpush.bf16.msra.mxu0 %v1084
        %1576 = vmatpush.bf16.msra.mxu0 %v1080
        %1577 = vmatpush.bf16.msra.mxu0 %v1076
        %1578 = vmatpush.bf16.msra.mxu0 %v1072
        %1579 = vmatpush.bf16.msra.mxu0 %v1068
        %1580 = vmatpush.bf16.msra.mxu0 %v1064
        %1581 = vmatpush.bf16.msra.mxu0 %v1060
        %1582 = vmatpush.bf16.msra.mxu0 %v1056
        %1583 = vmatmul.bf16.gmra.mxu0 %v435
        %v1584 = vpop.f32.mrf.mxu0
        %v1585 = vadd.f32 %v1572, %v1584
        %v1586 = vpop.f32.mrf.mxu0
        %1587 = vdwg.mxu0
        %1588 = vmatpush.bf16.msra.mxu0 %v1116
        %1589 = vmatpush.bf16.msra.mxu0 %v1112
        %1590 = vmatpush.bf16.msra.mxu0 %v1108
        %1591 = vmatpush.bf16.msra.mxu0 %v1104
        %1592 = vmatpush.bf16.msra.mxu0 %v1100
        %1593 = vmatpush.bf16.msra.mxu0 %v1096
        %1594 = vmatpush.bf16.msra.mxu0 %v1092
        %1595 = vmatpush.bf16.msra.mxu0 %v1088
        %1596 = vmatmul.bf16.gmra.mxu0 %v436
        %v1597 = vpop.f32.mrf.mxu0
        %v1598 = vadd.f32 %v1585, %v1597
        %v1599 = vpop.f32.mrf.mxu0
        %1600 = vdwg.mxu0
        %1601 = vmatpush.bf16.msra.mxu0 %v1148
        %1602 = vmatpush.bf16.msra.mxu0 %v1144
        %1603 = vmatpush.bf16.msra.mxu0 %v1140
        %1604 = vmatpush.bf16.msra.mxu0 %v1136
        %1605 = vmatpush.bf16.msra.mxu0 %v1132
        %1606 = vmatpush.bf16.msra.mxu0 %v1128
        %1607 = vmatpush.bf16.msra.mxu0 %v1124
        %1608 = vmatpush.bf16.msra.mxu0 %v1120
        %1609 = vmatmul.bf16.gmra.mxu0 %v437
        %v1610 = vpop.f32.mrf.mxu0
        %v1611 = vadd.f32 %v1598, %v1610
        %v1612 = vpop.f32.mrf.mxu0
        %1613 = vdwg.mxu0
        %1614 = vmatpush.bf16.msra.mxu0 %v1180
        %1615 = vmatpush.bf16.msra.mxu0 %v1176
        %1616 = vmatpush.bf16.msra.mxu0 %v1172
        %1617 = vmatpush.bf16.msra.mxu0 %v1168
        %1618 = vmatpush.bf16.msra.mxu0 %v1164
        %1619 = vmatpush.bf16.msra.mxu0 %v1160
        %1620 = vmatpush.bf16.msra.mxu0 %v1156
        %1621 = vmatpush.bf16.msra.mxu0 %v1152
        %1622 = vmatmul.bf16.gmra.mxu0 %v438
        %v1623 = vpop.f32.mrf.mxu0
        %v1624 = vadd.f32 %v1611, %v1623
        %v1625 = vpop.f32.mrf.mxu0
        %1626 = vdwg.mxu0
        %1627 = vmatpush.bf16.msra.mxu0 %v1212
        %1628 = vmatpush.bf16.msra.mxu0 %v1208
        %1629 = vmatpush.bf16.msra.mxu0 %v1204
        %1630 = vmatpush.bf16.msra.mxu0 %v1200
        %1631 = vmatpush.bf16.msra.mxu0 %v1196
        %1632 = vmatpush.bf16.msra.mxu0 %v1192
        %1633 = vmatpush.bf16.msra.mxu0 %v1188
        %1634 = vmatpush.bf16.msra.mxu0 %v1184
        %1635 = vmatmul.bf16.gmra.mxu0 %v439
        %v1636 = vpop.f32.mrf.mxu0
        %v1637 = vadd.f32 %v1624, %v1636
        %v1638 = vpop.f32.mrf.mxu0
        %1639 = vdwg.mxu0
        %1640 = vmatpush.bf16.msra.mxu0 %v1053
        %1641 = vmatpush.bf16.msra.mxu0 %v1049
        %1642 = vmatpush.bf16.msra.mxu0 %v1045
        %1643 = vmatpush.bf16.msra.mxu0 %v1041
        %1644 = vmatpush.bf16.msra.mxu0 %v1037
        %1645 = vmatpush.bf16.msra.mxu0 %v1033
        %1646 = vmatpush.bf16.msra.mxu0 %v1029
        %1647 = vmatpush.bf16.msra.mxu0 %v1025
        %1648 = vmatmul.bf16.gmra.mxu0 %v434
        %v1649 = vpop.f32.mrf.mxu0
        %v1650 = vadd.f32 %v420, %v1649
        %v1651 = vpop.f32.mrf.mxu0
        %1652 = vdwg.mxu0
        %1653 = vmatpush.bf16.msra.mxu0 %v1085
        %1654 = vmatpush.bf16.msra.mxu0 %v1081
        %1655 = vmatpush.bf16.msra.mxu0 %v1077
        %1656 = vmatpush.bf16.msra.mxu0 %v1073
        %1657 = vmatpush.bf16.msra.mxu0 %v1069
        %1658 = vmatpush.bf16.msra.mxu0 %v1065
        %1659 = vmatpush.bf16.msra.mxu0 %v1061
        %1660 = vmatpush.bf16.msra.mxu0 %v1057
        %1661 = vmatmul.bf16.gmra.mxu0 %v435
        %v1662 = vpop.f32.mrf.mxu0
        %v1663 = vadd.f32 %v1650, %v1662
        %v1664 = vpop.f32.mrf.mxu0
        %1665 = vdwg.mxu0
        %1666 = vmatpush.bf16.msra.mxu0 %v1117
        %1667 = vmatpush.bf16.msra.mxu0 %v1113
        %1668 = vmatpush.bf16.msra.mxu0 %v1109
        %1669 = vmatpush.bf16.msra.mxu0 %v1105
        %1670 = vmatpush.bf16.msra.mxu0 %v1101
        %1671 = vmatpush.bf16.msra.mxu0 %v1097
        %1672 = vmatpush.bf16.msra.mxu0 %v1093
        %1673 = vmatpush.bf16.msra.mxu0 %v1089
        %1674 = vmatmul.bf16.gmra.mxu0 %v436
        %v1675 = vpop.f32.mrf.mxu0
        %v1676 = vadd.f32 %v1663, %v1675
        %v1677 = vpop.f32.mrf.mxu0
        %1678 = vdwg.mxu0
        %1679 = vmatpush.bf16.msra.mxu0 %v1149
        %1680 = vmatpush.bf16.msra.mxu0 %v1145
        %1681 = vmatpush.bf16.msra.mxu0 %v1141
        %1682 = vmatpush.bf16.msra.mxu0 %v1137
        %1683 = vmatpush.bf16.msra.mxu0 %v1133
        %1684 = vmatpush.bf16.msra.mxu0 %v1129
        %1685 = vmatpush.bf16.msra.mxu0 %v1125
        %1686 = vmatpush.bf16.msra.mxu0 %v1121
        %1687 = vmatmul.bf16.gmra.mxu0 %v437
        %v1688 = vpop.f32.mrf.mxu0
        %v1689 = vadd.f32 %v1676, %v1688
        %v1690 = vpop.f32.mrf.mxu0
        %1691 = vdwg.mxu0
        %1692 = vmatpush.bf16.msra.mxu0 %v1181
        %1693 = vmatpush.bf16.msra.mxu0 %v1177
        %1694 = vmatpush.bf16.msra.mxu0 %v1173
        %1695 = vmatpush.bf16.msra.mxu0 %v1169
        %1696 = vmatpush.bf16.msra.mxu0 %v1165
        %1697 = vmatpush.bf16.msra.mxu0 %v1161
        %1698 = vmatpush.bf16.msra.mxu0 %v1157
        %1699 = vmatpush.bf16.msra.mxu0 %v1153
        %1700 = vmatmul.bf16.gmra.mxu0 %v438
        %v1701 = vpop.f32.mrf.mxu0
        %v1702 = vadd.f32 %v1689, %v1701
        %v1703 = vpop.f32.mrf.mxu0
        %1704 = vdwg.mxu0
        %1705 = vmatpush.bf16.msra.mxu0 %v1213
        %1706 = vmatpush.bf16.msra.mxu0 %v1209
        %1707 = vmatpush.bf16.msra.mxu0 %v1205
        %1708 = vmatpush.bf16.msra.mxu0 %v1201
        %1709 = vmatpush.bf16.msra.mxu0 %v1197
        %1710 = vmatpush.bf16.msra.mxu0 %v1193
        %1711 = vmatpush.bf16.msra.mxu0 %v1189
        %1712 = vmatpush.bf16.msra.mxu0 %v1185
        %1713 = vmatmul.bf16.gmra.mxu0 %v439
        %v1714 = vpop.f32.mrf.mxu0
        %v1715 = vadd.f32 %v1702, %v1714
        %v1716 = vpop.f32.mrf.mxu0
        %1717 = vdwg.mxu0
        %v1718 = vtanh.pop %v1481
        %v1719 = vtanh.pop %v1559
        %v1720 = vtanh.pop %v1637
        %v1721 = vtanh.pop %v1715
        %s1722 = scalar_lea.vmem [#allocation7], 1
        %v1723 = vld [vmem:[%s1722] ss:$2 sm:$0xf]
        %v1725 = vperm.slane %v1723, 0
        %v1726 = vperm.slane %v1723, 1
        %v1727 = vperm.slane %v1723, 2
        %v1728 = vperm.slane %v1723, 3
        %v1733 = vmul.f32 %v1718, %v1725
        %v1734 = vmul.f32 %v1719, %v1726
        %v1735 = vmul.f32 %v1720, %v1727
        %v1736 = vmul.f32 %v1721, %v1728
        %v1737 = vadd.f32 %v1733, %v1734
        %v1738 = vadd.f32 %v1737, %v1735
        %v1739 = vadd.f32 %v1738, %v1736
        %1740 = vadd.xlane.f32.xlu0 %v1739
        %v1741 = vpop.xlane.xlu0 %1740
        %v1742 = vrot.slane %v1741, 4
        %v1743 = vmax.f32 %v1741, %v1742
        %v1744 = vrot.slane %v1743, 2
        %v1745 = vmax.f32 %v1743, %v1744
        %v1746 = vrot.slane %v1745, 1
        %v1747 = vmax.f32 %v1745, %v1746
        %v1748 = vsub.f32 %v1741, %v1747
        %v1749 = vmul.f32 %v1748, 1.442695
        %v1750 = vpow.pop %v1749
        %v1751 = vrot.slane %v1750, 4
        %v1752 = vadd.f32 %v1750, %v1751
        %v1753 = vrot.slane %v1752, 2
        %v1754 = vadd.f32 %v1752, %v1753
        %v1755 = vrot.slane %v1754, 1
        %v1756 = vadd.f32 %v1754, %v1755
        %v1757 = vrcp.pop %v1756
        %v1758 = vmul.f32 %v1750, %v1757
        %v1759 = vunpack.c.l.bf16 %v220
        %v1760 = vunpack.c.h.bf16 %v220
        %v1761 = vunpack.c.l.bf16 %v221
        %v1762 = vunpack.c.h.bf16 %v221
        %v1763 = vunpack.c.l.bf16 %v222
        %v1764 = vunpack.c.h.bf16 %v222
        %v1765 = vmul.f32 %v1758, %v1759
        %v1766 = vmul.f32 %v1758, %v1760
        %v1767 = vmul.f32 %v1758, %v1761
        %v1768 = vmul.f32 %v1758, %v1762
        %v1769 = vmul.f32 %v1758, %v1763
        %v1770 = vmul.f32 %v1758, %v1764
        %v1771 = vrot.slane %v1765, 4
        %v1772 = vadd.f32 %v1765, %v1771
        %v1773 = vrot.slane %v1772, 2
        %v1774 = vadd.f32 %v1772, %v1773
        %v1775 = vrot.slane %v1774, 1
        %v1776 = vadd.f32 %v1774, %v1775
        %v1777 = vrot.slane %v1766, 4
        %v1778 = vadd.f32 %v1766, %v1777
        %v1779 = vrot.slane %v1778, 2
        %v1780 = vadd.f32 %v1778, %v1779
        %v1781 = vrot.slane %v1780, 1
        %v1782 = vadd.f32 %v1780, %v1781
        %v1783 = vrot.slane %v1767, 4
        %v1784 = vadd.f32 %v1767, %v1783
        %v1785 = vrot.slane %v1784, 2
        %v1786 = vadd.f32 %v1784, %v1785
        %v1787 = vrot.slane %v1786, 1
        %v1788 = vadd.f32 %v1786, %v1787
        %v1789 = vrot.slane %v1768, 4
        %v1790 = vadd.f32 %v1768, %v1789
        %v1791 = vrot.slane %v1790, 2
        %v1792 = vadd.f32 %v1790, %v1791
        %v1793 = vrot.slane %v1792, 1
        %v1794 = vadd.f32 %v1792, %v1793
        %v1795 = vrot.slane %v1769, 4
        %v1796 = vadd.f32 %v1769, %v1795
        %v1797 = vrot.slane %v1796, 2
        %v1798 = vadd.f32 %v1796, %v1797
        %v1799 = vrot.slane %v1798, 1
        %v1800 = vadd.f32 %v1798, %v1799
        %v1801 = vrot.slane %v1770, 4
        %v1802 = vadd.f32 %v1770, %v1801
        %v1803 = vrot.slane %v1802, 2
        %v1804 = vadd.f32 %v1802, %v1803
        %v1805 = vrot.slane %v1804, 1
        %v1806 = vadd.f32 %v1804, %v1805
        %v1813 = vrot.slane %v1782, 7
        %v1814 = vrot.slane %v1788, 6
        %v1815 = vrot.slane %v1794, 5
        %v1816 = vrot.slane %v1800, 4
        %v1817 = vrot.slane %v1806, 3
        %vm1818 = vcmask 1040384
        %v1819 = vsel %vm1818, %v1776, %v1813
        %vm1820 = vcmask 1041408
        %v1821 = vsel %vm1820, %v1819, %v1814
        %vm1822 = vcmask 1043459
        %v1823 = vsel %vm1822, %v1815, %v1816
        %vm1824 = vcmask 1044483
        %v1825 = vsel %vm1824, %v1823, %v1817
        %vm1826 = vcmask 1042432
        %v1827 = vsel %vm1826, %v1821, %v1825
        %v1829 = vlaneseq
        %vm1830 = vcmp.ge.s32.totalorder %v1829, 0
        %vm1831 = vcmp.lt.s32.totalorder %v1829, 768
        %vm1832 = vmand %vm1830, %vm1831
        %1833 = vst.msk [vmem:[%s219] sm:$0x3f] %vm1832, %v1827
        %s1834 = sand.u32 %s97, 1
        %s1835 = scalar_lea.sflag [#allocation4], %s1834
        %s1836 = sand.u32 %s97, 1
        %s1837 = smul.addr %s1836, 6
        %s1838 = scalar_lea.vmem [#allocation8], %s1837
        // Predicated region
        $region45: #{tpu_custom_call.1} parent=31 // pred_check
          %p1839 = pneg %p107
        $region46: #{tpu_custom_call.1} parent=31 // pred_check_branch
          %1841 = sbr.rel (%p1839) target = $region48
        $region47: #{tpu_custom_call.1} parent=31 // pred_region
          %1843 = vsyncadd %s1835, 0
          %s1844 = smul.addr %s21, 6
          %s1845 = scalar_lea.hbm %s3, %s1844
          %s1847 = sshll.u32 %s1838, 4
          %s1848 = int_to_ptr.vmem [resolvable:$true] %s1847
          %s1849 = sshll.u32 %s1845, 4
          %s1850 = int_to_ptr.hbm [resolvable:$true] %s1849
          %1852 = dma.vmem_to_hbm [thread:$0]  %s1848, 96, %s1850, %s1835
        $region48: #{tpu_custom_call.1} parent=31 // pred_fallthru
          _
      $region32: #{tpu_custom_call.1} parent=5 // pred_fallthru
        _
      %p1853 = scmp.le.s32.totalorder 2, %s16
      // Predicated region
      $region49: #{tpu_custom_call.1} parent=5 // pred_check
        %p1854 = pneg %p1853
      $region50: #{tpu_custom_call.1} parent=5 // pred_check_branch
        %1856 = sbr.rel (%p1854) target = $region52
      $region51: #{tpu_custom_call.1} parent=5 // pred_region
        %s1857 = ssub.s32 %s16, 2
        // Predicated region
        $region53: #{tpu_custom_call.1} parent=51 // pred_check
          %p1858 = pneg %p113
        $region54: #{tpu_custom_call.1} parent=51 // pred_check_branch
          %1860 = sbr.rel (%p1858) target = $region56
        $region55: #{tpu_custom_call.1} parent=51 // pred_region
          %s1861 = sand.u32 %s98, 1
          %s1862 = scalar_lea.sflag [#allocation4], %s1861
          %s1863 = sand.u32 %s98, 1
          %s1864 = smul.addr %s1863, 6
          %s1865 = scalar_lea.vmem [#allocation8], %s1864
          %1867 = dma.done %s1862, 96
        $region56: #{tpu_custom_call.1} parent=51 // pred_fallthru
          _
      $region52: #{tpu_custom_call.1} parent=5 // pred_fallthru
        _
    $region6: #{tpu_custom_call.1} parent=1 // loop_footer
      %s20 = sadd.s32 1, %s16
    $region7: #{tpu_custom_call.1} parent=1 // loop_footer_branch
      %15 = sbr.rel target = $region3
    $region8: #{tpu_custom_call.1} parent=1 // loop_exit
      _
    %1868 = vsyncpa [#allocation3], 1
    %s1869 = scalar_lea.sflag [#allocation3], 1
    %1870 = vsyncpa %s1869, 1
    %1871 = vsyncpa [#allocation6], 1
    %1872 = vsyncpa [#allocation4], 1
    %s1873 = scalar_lea.sflag [#allocation4], 1
    %1874 = vsyncpa %s1873, 1

</llo_original>
